<compile_context>
chip_gen: v5e
topology: v5e:2x2
jax: 0.10.0
libtpu: 0.0.40
codegen_flags: <defaults>
</compile_context>

<pallas_src>
import math
import functools

import jax
import jax.numpy as jnp
from jax.experimental import pallas as pl
from jax.experimental.pallas import tpu as pltpu


def _round_up(x, m):
    return (x + m - 1) // m * m


def _device_kind():
    try:
        return jax.devices()[0].device_kind.lower()
    except Exception:
        return ""


def _vmem_limit_bytes(kind):
    # v5e/v6e have 128 MiB physical VMEM -> raise the scoped limit well above
    # the 16/32 MiB defaults; v7x has only 64 MiB physical -> keep headroom
    # for Mosaic internal scratch and double buffering.
    if "v5" in kind or "v6" in kind:
        return 100 * 1024 * 1024
    return 48 * 1024 * 1024


def _pick_tco(kind, cout):
    # v6e/v7x MXU is 256 wide -> 256-wide Cout tiles when there are enough
    # output channels; on v5e (128-wide MXU) wider tiles only add VMEM use.
    if cout >= 256 and "v5" not in kind:
        return 256
    return 128


def _conv2d_kernel(x_ref, w_ref, b_ref, o_ref, xpad_ref, patch_ref, *,
                   ksize, padding, H, W, Cin, TH, Wo, KK, base_col):
    """One (batch image, Ho tile, Cout tile) grid step.

    x_ref    : (1, H, W, Cin)   f32   raw NHWC image (unpadded)
    w_ref    : (KK, TCO)        cdt   dense im2col weight tile (K zero-padded)
    b_ref    : (1, TCO)         f32   bias tile (zero-padded)
    o_ref    : (1, TH*Wo, TCO)  f32   lane-dense output tile
    xpad_ref : (Hp, Wp, Cin)    f32   scratch: zero-bordered padded image
    patch_ref: (TH, Wo, KK)     cdt   scratch: dense im2col patch for this tile
    """
    r = pl.program_id(1)          # Ho-tile index     ("arbitrary")
    j = pl.program_id(2)          # Cout-tile index   ("arbitrary")

    # ---- 1) padded input: built once per image (scratch persists over r, j).
    @pl.when((r == 0) & (j == 0))
    def _build_padded_input():
        if padding > 0:
            wrd = W + 2 * padding              # columns that are ever read
            zdt = xpad_ref.dtype
            # Zero only the halo border: the interior is overwritten below and
            # columns [0, base_col) are never read.
            xpad_ref[pl.ds(0, padding), pl.ds(base_col, wrd), :] = (
                jnp.zeros((padding, wrd, Cin), zdt))
            xpad_ref[pl.ds(padding + H, padding), pl.ds(base_col, wrd), :] = (
                jnp.zeros((padding, wrd, Cin), zdt))
            xpad_ref[pl.ds(padding, H), pl.ds(base_col, padding), :] = (
                jnp.zeros((H, padding, Cin), zdt))
            xpad_ref[pl.ds(padding, H),
                     pl.ds(base_col + padding + W, padding), :] = (
                jnp.zeros((H, padding, Cin), zdt))
        # Interior store lands at an 8-aligned sublane offset
        # (base_col + padding), so it needs no sublane rotation.
        xpad_ref[pl.ds(padding, H), pl.ds(base_col + padding, W), :] = (
            x_ref[0].astype(xpad_ref.dtype))

    # ---- 2) dense im2col for this Ho tile: built once per (image, Ho tile)
    #         and reused across all Cout tiles (j).
    @pl.when(j == 0)
    def _build_patch():
        kkc = ksize * ksize * Cin
        if KK != kkc:
            # The K padding tail multiplies zero weight rows, but it must be
            # finite (scratch is uninitialized garbage on first touch).
            patch_ref[:, :, kkc:] = jnp.zeros((TH, Wo, KK - kkc),
                                              patch_ref.dtype)
        row0 = r * TH
        tap = 0
        for kh in range(ksize):
            for kw in range(ksize):
                win = xpad_ref[pl.ds(row0 + kh, TH),
                               pl.ds(base_col + kw, Wo), :]      # (TH, Wo, Cin)
                # lane offset tap*Cin (aligned whenever Cin % 128 == 0)
                patch_ref[:, :, tap * Cin:(tap + 1) * Cin] = (
                    win.astype(patch_ref.dtype))
                tap += 1

    # ---- 3) one MXU matmul over the whole receptive field, f32 accumulation,
    #         bias fused in the epilogue, 128/256-lane dense output store.
    #         (reshape is layout-preserving when Wo is a multiple of the
    #          sublane tile, e.g. Wo % 8 == 0 for f32.)
    p2 = patch_ref[...].reshape(TH * Wo, KK)
    acc = jnp.dot(p2, w_ref[...], preferred_element_type=jnp.float32)
    acc = acc + b_ref[...]
    o_ref[...] = acc[None].astype(o_ref.dtype)


def conv2d_forward(x_nchw, weight, bias, mask, *, stride=1, padding=1,
                   compute_dtype=jnp.float32):
    """Pallas equivalent of F.conv2d(x, weight * mask, bias, stride, padding).

    compute_dtype: dtype of the im2col patch and the weights fed to the MXU
      (accumulation is always f32).  jnp.bfloat16 is the recommended setting
      on v6e/v7x (2-3x MXU throughput, half the patch footprint).
    """
    if stride != 1:
        # TODO(synk): stride > 1 needs strided sublane window reads; the
        # module default (stride=1) is the only exercised/verified path.
        raise NotImplementedError("conv2d_forward currently supports stride=1")

    # --- parameter plumbing (pure JAX glue) ---
    Om, Im = int(mask.shape[0]), int(mask.shape[1])
    if weight.shape[:2] != mask.shape[:2]:
        # growth headroom (width_ratio) case: only the masked extent is used.
        weight = weight[:Om, :Im]
        if bias is not None:
            bias = bias[:Om]
    w_m = (weight * mask).astype(jnp.float32)          # (Cout, Cin, k, k)
    Cout, Cin, kh_, kw_ = w_m.shape
    assert kh_ == kw_
    ksize = int(kh_)
    b = (jnp.zeros((Cout,), jnp.float32) if bias is None
         else bias[:Cout].astype(jnp.float32))

    N, C, H, W = x_nchw.shape
    assert C == Cin
    Ho = (H + 2 * padding - ksize) // stride + 1
    Wo = (W + 2 * padding - ksize) // stride + 1
    R = Ho * Wo

    kind = _device_kind()
    vmem_limit = _vmem_limit_bytes(kind)
    TCO = _pick_tco(kind, Cout)
    Cout_pad = _round_up(Cout, TCO)
    n_co = Cout_pad // TCO

    # Dense im2col contraction dim: pad the TOTAL K once (not per tap).
    KKC = ksize * ksize * Cin
    KK = _round_up(KKC, 128)

    # 8-aligned sublane column for the interior store of the padded image.
    S = _round_up(padding, 8) if padding > 0 else 0
    base_col = S - padding
    Hp = H + 2 * padding
    Wp = base_col + W + 2 * padding

    # --- Ho tile selection: largest divisor of Ho whose working set fits ----
    c_isz = jnp.dtype(compute_dtype).itemsize
    fixed = Hp * Wp * Cin * 4                 # padded-image scratch (f32)
    fixed += 2 * H * W * Cin * 4              # double-buffered x block (f32)
    fixed += 2 * KK * TCO * c_isz             # double-buffered weight block
    fixed += 2 * TCO * 4                      # bias block
    per_row = Wo * KK * c_isz                 # patch scratch rows
    per_row += 2 * Wo * TCO * 4               # double-buffered output rows
    budget = (vmem_limit * 3) // 4
    divisors = [d for d in range(Ho, 0, -1) if Ho % d == 0]
    TH = None
    for d in divisors:
        legal = (d == Ho) or ((d * Wo) % 8 == 0)   # output block 2nd-minor dim
        if legal and fixed + d * per_row <= budget:
            TH = d
            break
    if TH is None:                            # nothing fits: smallest legal tile
        legal_divs = [d for d in divisors if (d * Wo) % 8 == 0]
        TH = min(legal_divs) if legal_divs else Ho
    n_r = Ho // TH

    # NCHW -> NHWC: channels must sit on the lane axis inside the kernel; the
    # PyTorch-facing boundary is NCHW so this transpose stays in the wrapper.
    x = jnp.transpose(x_nchw, (0, 2, 3, 1)).astype(jnp.float32)

    # (Cout, Cin, k, k) -> dense im2col weight (KK, Cout_pad), bias (1, Cout_pad)
    w_kkc = jnp.transpose(w_m, (2, 3, 1, 0)).reshape(KKC, Cout)
    w2 = jnp.zeros((KK, Cout_pad), compute_dtype)
    w2 = w2.at[:KKC, :Cout].set(w_kkc.astype(compute_dtype))
    b2 = jnp.zeros((1, Cout_pad), jnp.float32).at[0, :Cout].set(b)

    kernel = functools.partial(
        _conv2d_kernel, ksize=ksize, padding=padding, H=H, W=W, Cin=Cin,
        TH=TH, Wo=Wo, KK=KK, base_col=base_col)

    out_pad = pl.pallas_call(
        kernel,
        out_shape=jax.ShapeDtypeStruct((N, R, Cout_pad), jnp.float32),
        grid=(N, n_r, n_co),
        in_specs=[
            # image: only re-fetched when the batch index changes
            pl.BlockSpec((1, H, W, Cin), lambda n, r, j: (n, 0, 0, 0)),
            pl.BlockSpec((KK, TCO), lambda n, r, j: (0, j)),
            pl.BlockSpec((1, TCO), lambda n, r, j: (0, j)),
        ],
        out_specs=pl.BlockSpec((1, TH * Wo, TCO), lambda n, r, j: (n, r, j)),
        scratch_shapes=[
            pltpu.VMEM((Hp, Wp, Cin), jnp.float32),       # padded input image
            pltpu.VMEM((TH, Wo, KK), compute_dtype),      # dense im2col patch
        ],
        compiler_params=pltpu.CompilerParams(
            # Batch is megacore-parallel (needs N >= 2 to use both TCs on
            # v7x); the Ho-tile and Cout-tile axes are "arbitrary" so the
            # pl.when-gated scratch (xpad / patch) stays on its owning core.
            dimension_semantics=("parallel", "arbitrary", "arbitrary"),
            vmem_limit_bytes=vmem_limit,
        ),
    )(x, w2, b2)

    # drop Cout padding, back to NCHW (PyTorch output convention)
    out = out_pad[:, :, :Cout].reshape(N, Ho, Wo, Cout)
    return jnp.transpose(out, (0, 3, 1, 2))


def init_conv2d_params(key, in_chann, out_chann, ksize=3, width_ratio=1.1,
                       bias=True):
    """Deterministic parameter init mirroring _Conv2d.__init__."""
    out_chann_max = int(width_ratio * out_chann)
    in_chann_max = 3 if in_chann == 3 else int(width_ratio * in_chann)
    stdv = math.sqrt(2.0 / (out_chann * 3.0 * 3.0))
    weight = stdv * jax.random.normal(
        key, (out_chann_max, in_chann_max, ksize, ksize), dtype=jnp.float32)
    mask = jnp.ones((out_chann, in_chann, ksize, ksize), dtype=jnp.float32)
    if weight.shape[:2] == mask.shape[:2]:
        weight = weight * mask           # weight.data = weight.data * mask.data
    b = jnp.zeros((out_chann_max,), jnp.float32) if bias else None
    return weight, b, mask


if __name__ == "__main__":
    key = jax.random.PRNGKey(0)
    k_w, k_x = jax.random.split(key)

    # small shapes: batch=2, in_chann=4, out_chann=4, spatial=16
    in_chann, out_chann, ksize, padding, stride = 4, 4, 3, 1, 1
    weight, bias, mask = init_conv2d_params(k_w, in_chann, out_chann, ksize)

    x = jax.random.normal(k_x, (2, in_chann, 16, 16), dtype=jnp.float32)  # NCHW

    # reference: XLA's native conv (same semantics as F.conv2d)
    ref = jax.lax.conv_general_dilated(
        x, weight * mask, window_strides=(stride, stride),
        padding=[(padding, padding), (padding, padding)],
        dimension_numbers=("NCHW", "OIHW", "NCHW"))
    ref = ref + bias[:out_chann].reshape(1, -1, 1, 1)

    # exact-precision path (f32 patch/weights, f32 accumulation)
    out_f32 = conv2d_forward(x, weight, bias, mask, stride=stride,
                             padding=padding, compute_dtype=jnp.float32)
    out_f32 = jax.block_until_ready(out_f32)
    assert out_f32.shape == ref.shape == (2, out_chann, 16, 16)
    assert jnp.max(jnp.abs(out_f32 - ref)) < 1e-4

    # MXU-native bf16 path (perf recommendation for v6e/v7x): bf16 inputs,
    # f32 accumulation -> looser tolerance against the f32 reference.
    out_bf16 = conv2d_forward(x, weight, bias, mask, stride=stride,
                              padding=padding, compute_dtype=jnp.bfloat16)
    out_bf16 = jax.block_until_ready(out_bf16)
    assert out_bf16.shape == ref.shape
    assert jnp.max(jnp.abs(out_bf16 - ref)) < 1e-1

    print("KERNEL_OK")
</pallas_src>

<mosaic_0001>
module attributes {stable_mosaic.version = 11 : i64} {
  func.func @_conv2d_kernel(%arg0: i32, %arg1: i32, %arg2: i32, %arg3: memref<1x16x16x4xf32, #tpu.memory_space<vmem>>, %arg4: memref<128x128xf32, #tpu.memory_space<vmem>>, %arg5: memref<1x128xf32, #tpu.memory_space<vmem>>, %arg6: memref<1x256x128xf32, #tpu.memory_space<vmem>>, %arg7: memref<18x25x4xf32, #tpu.memory_space<vmem>>, %arg8: memref<16x16x128xf32, #tpu.memory_space<vmem>>) attributes {dimension_semantics = [#tpu.dimension_semantics<parallel>, #tpu.dimension_semantics<arbitrary>, #tpu.dimension_semantics<arbitrary>], iteration_bounds = array<i64: 2, 1, 1>, scalar_prefetch = 0 : i64, scratch_operands = 2 : i64, tpu.core_type = #tpu.core_type<tc>, window_params = [{transform_indices = @transform_0, window_bounds = array<i64: 1, 16, 16, 4>}, {transform_indices = @transform_1, window_bounds = array<i64: 128, 128>}, {transform_indices = @transform_2, window_bounds = array<i64: 1, 128>}, {transform_indices = @transform_3, window_bounds = array<i64: 1, 256, 128>}]} {
    %c0_i32 = arith.constant 0 : i32
    %0 = arith.cmpi eq, %arg1, %c0_i32 : i32
    %c0_i32_0 = arith.constant 0 : i32
    %1 = arith.cmpi eq, %arg2, %c0_i32_0 : i32
    %2 = arith.andi %0, %1 : i1
    %3 = arith.extui %2 : i1 to i32
    %c0_i32_1 = arith.constant 0 : i32
    %4 = arith.cmpi ne, %3, %c0_i32_1 : i32
    scf.if %4 {
      %cst_13 = arith.constant 0.000000e+00 : f32
      %17 = vector.broadcast %cst_13 : f32 to vector<1x18x4xf32>
      %c0_14 = arith.constant 0 : index
      %c7 = arith.constant 7 : index
      %c0_15 = arith.constant 0 : index
      %18 = vector.load %arg7[%c0_14, %c7, %c0_15] : memref<18x25x4xf32, #tpu.memory_space<vmem>>, vector<1x18x4xf32>
      tpu.vector_store %arg7[%c0_14, %c7, %c0_15], %17 {strides = array<i32>} : memref<18x25x4xf32, #tpu.memory_space<vmem>>, vector<1x18x4xf32>,
      %cst_16 = arith.constant 0.000000e+00 : f32
      %19 = vector.broadcast %cst_16 : f32 to vector<1x18x4xf32>
      %c17 = arith.constant 17 : index
      %c7_17 = arith.constant 7 : index
      %c0_18 = arith.constant 0 : index
      %20 = vector.load %arg7[%c17, %c7_17, %c0_18] : memref<18x25x4xf32, #tpu.memory_space<vmem>>, vector<1x18x4xf32>
      tpu.vector_store %arg7[%c17, %c7_17, %c0_18], %19 {strides = array<i32>} : memref<18x25x4xf32, #tpu.memory_space<vmem>>, vector<1x18x4xf32>,
      %cst_19 = arith.constant 0.000000e+00 : f32
      %21 = vector.broadcast %cst_19 : f32 to vector<16x1x4xf32>
      %c1 = arith.constant 1 : index
      %c7_20 = arith.constant 7 : index
      %c0_21 = arith.constant 0 : index
      %22 = vector.load %arg7[%c1, %c7_20, %c0_21] : memref<18x25x4xf32, #tpu.memory_space<vmem>>, vector<16x1x4xf32>
      tpu.vector_store %arg7[%c1, %c7_20, %c0_21], %21 {strides = array<i32>} : memref<18x25x4xf32, #tpu.memory_space<vmem>>, vector<16x1x4xf32>,
      %cst_22 = arith.constant 0.000000e+00 : f32
      %23 = vector.broadcast %cst_22 : f32 to vector<16x1x4xf32>
      %c1_23 = arith.constant 1 : index
      %c24 = arith.constant 24 : index
      %c0_24 = arith.constant 0 : index
      %24 = vector.load %arg7[%c1_23, %c24, %c0_24] : memref<18x25x4xf32, #tpu.memory_space<vmem>>, vector<16x1x4xf32>
      tpu.vector_store %arg7[%c1_23, %c24, %c0_24], %23 {strides = array<i32>} : memref<18x25x4xf32, #tpu.memory_space<vmem>>, vector<16x1x4xf32>,
      %c0_25 = arith.constant 0 : index
      %c0_26 = arith.constant 0 : index
      %c0_27 = arith.constant 0 : index
      %c0_28 = arith.constant 0 : index
      %25 = vector.load %arg3[%c0_25, %c0_26, %c0_27, %c0_28] : memref<1x16x16x4xf32, #tpu.memory_space<vmem>>, vector<1x16x16x4xf32>
      %26 = vector.shape_cast %25 : vector<1x16x16x4xf32> to vector<16x16x4xf32>
      %c1_29 = arith.constant 1 : index
      %c8 = arith.constant 8 : index
      %c0_30 = arith.constant 0 : index
      %27 = vector.load %arg7[%c1_29, %c8, %c0_30] : memref<18x25x4xf32, #tpu.memory_space<vmem>>, vector<16x16x4xf32>
      tpu.vector_store %arg7[%c1_29, %c8, %c0_30], %26 {strides = array<i32>} : memref<18x25x4xf32, #tpu.memory_space<vmem>>, vector<16x16x4xf32>,
    } else {
    }
    %c0_i32_2 = arith.constant 0 : i32
    %5 = arith.cmpi eq, %arg2, %c0_i32_2 : i32
    %6 = arith.extui %5 : i1 to i32
    %c0_i32_3 = arith.constant 0 : i32
    %7 = arith.cmpi ne, %6, %c0_i32_3 : i32
    scf.if %7 {
      %cst_13 = arith.constant 0.000000e+00 : f32
      %17 = vector.broadcast %cst_13 : f32 to vector<16x16x92xf32>
      %c0_14 = arith.constant 0 : index
      %c0_15 = arith.constant 0 : index
      %c36 = arith.constant 36 : index
      %18 = vector.load %arg8[%c0_14, %c0_15, %c36] : memref<16x16x128xf32, #tpu.memory_space<vmem>>, vector<16x16x92xf32>
      tpu.vector_store %arg8[%c0_14, %c0_15, %c36], %17 {strides = array<i32>} : memref<16x16x128xf32, #tpu.memory_space<vmem>>, vector<16x16x92xf32>,
      %c16_i32 = arith.constant 16 : i32
      %19 = arith.muli %arg1, %c16_i32 : i32
      %c0_i32_16 = arith.constant 0 : i32
      %20 = arith.addi %19, %c0_i32_16 : i32
      %21 = arith.index_cast %20 : i32 to index
      %c7 = arith.constant 7 : index
      %c0_17 = arith.constant 0 : index
      %22 = vector.load %arg7[%21, %c7, %c0_17] : memref<18x25x4xf32, #tpu.memory_space<vmem>>, vector<16x16x4xf32>
      %c0_18 = arith.constant 0 : index
      %c0_19 = arith.constant 0 : index
      %c0_20 = arith.constant 0 : index
      %23 = vector.load %arg8[%c0_18, %c0_19, %c0_20] : memref<16x16x128xf32, #tpu.memory_space<vmem>>, vector<16x16x4xf32>
      tpu.vector_store %arg8[%c0_18, %c0_19, %c0_20], %22 {strides = array<i32>} : memref<16x16x128xf32, #tpu.memory_space<vmem>>, vector<16x16x4xf32>,
      %c0_i32_21 = arith.constant 0 : i32
      %24 = arith.addi %19, %c0_i32_21 : i32
      %25 = arith.index_cast %24 : i32 to index
      %c8 = arith.constant 8 : index
      %c0_22 = arith.constant 0 : index
      %26 = vector.load %arg7[%25, %c8, %c0_22] : memref<18x25x4xf32, #tpu.memory_space<vmem>>, vector<16x16x4xf32>
      %c0_23 = arith.constant 0 : index
      %c0_24 = arith.constant 0 : index
      %c4 = arith.constant 4 : index
      %27 = vector.load %arg8[%c0_23, %c0_24, %c4] : memref<16x16x128xf32, #tpu.memory_space<vmem>>, vector<16x16x4xf32>
      tpu.vector_store %arg8[%c0_23, %c0_24, %c4], %26 {strides = array<i32>} : memref<16x16x128xf32, #tpu.memory_space<vmem>>, vector<16x16x4xf32>,
      %c0_i32_25 = arith.constant 0 : i32
      %28 = arith.addi %19, %c0_i32_25 : i32
      %29 = arith.index_cast %28 : i32 to index
      %c9 = arith.constant 9 : index
      %c0_26 = arith.constant 0 : index
      %30 = vector.load %arg7[%29, %c9, %c0_26] : memref<18x25x4xf32, #tpu.memory_space<vmem>>, vector<16x16x4xf32>
      %c0_27 = arith.constant 0 : index
      %c0_28 = arith.constant 0 : index
      %c8_29 = arith.constant 8 : index
      %31 = vector.load %arg8[%c0_27, %c0_28, %c8_29] : memref<16x16x128xf32, #tpu.memory_space<vmem>>, vector<16x16x4xf32>
      tpu.vector_store %arg8[%c0_27, %c0_28, %c8_29], %30 {strides = array<i32>} : memref<16x16x128xf32, #tpu.memory_space<vmem>>, vector<16x16x4xf32>,
      %c1_i32 = arith.constant 1 : i32
      %32 = arith.addi %19, %c1_i32 : i32
      %33 = arith.index_cast %32 : i32 to index
      %c7_30 = arith.constant 7 : index
      %c0_31 = arith.constant 0 : index
      %34 = vector.load %arg7[%33, %c7_30, %c0_31] : memref<18x25x4xf32, #tpu.memory_space<vmem>>, vector<16x16x4xf32>
      %c0_32 = arith.constant 0 : index
      %c0_33 = arith.constant 0 : index
      %c12 = arith.constant 12 : index
      %35 = vector.load %arg8[%c0_32, %c0_33, %c12] : memref<16x16x128xf32, #tpu.memory_space<vmem>>, vector<16x16x4xf32>
      tpu.vector_store %arg8[%c0_32, %c0_33, %c12], %34 {strides = array<i32>} : memref<16x16x128xf32, #tpu.memory_space<vmem>>, vector<16x16x4xf32>,
      %c1_i32_34 = arith.constant 1 : i32
      %36 = arith.addi %19, %c1_i32_34 : i32
      %37 = arith.index_cast %36 : i32 to index
      %c8_35 = arith.constant 8 : index
      %c0_36 = arith.constant 0 : index
      %38 = vector.load %arg7[%37, %c8_35, %c0_36] : memref<18x25x4xf32, #tpu.memory_space<vmem>>, vector<16x16x4xf32>
      %c0_37 = arith.constant 0 : index
      %c0_38 = arith.constant 0 : index
      %c16 = arith.constant 16 : index
      %39 = vector.load %arg8[%c0_37, %c0_38, %c16] : memref<16x16x128xf32, #tpu.memory_space<vmem>>, vector<16x16x4xf32>
      tpu.vector_store %arg8[%c0_37, %c0_38, %c16], %38 {strides = array<i32>} : memref<16x16x128xf32, #tpu.memory_space<vmem>>, vector<16x16x4xf32>,
      %c1_i32_39 = arith.constant 1 : i32
      %40 = arith.addi %19, %c1_i32_39 : i32
      %41 = arith.index_cast %40 : i32 to index
      %c9_40 = arith.constant 9 : index
      %c0_41 = arith.constant 0 : index
      %42 = vector.load %arg7[%41, %c9_40, %c0_41] : memref<18x25x4xf32, #tpu.memory_space<vmem>>, vector<16x16x4xf32>
      %c0_42 = arith.constant 0 : index
      %c0_43 = arith.constant 0 : index
      %c20 = arith.constant 20 : index
      %43 = vector.load %arg8[%c0_42, %c0_43, %c20] : memref<16x16x128xf32, #tpu.memory_space<vmem>>, vector<16x16x4xf32>
      tpu.vector_store %arg8[%c0_42, %c0_43, %c20], %42 {strides = array<i32>} : memref<16x16x128xf32, #tpu.memory_space<vmem>>, vector<16x16x4xf32>,
      %c2_i32 = arith.constant 2 : i32
      %44 = arith.addi %19, %c2_i32 : i32
      %45 = arith.index_cast %44 : i32 to index
      %c7_44 = arith.constant 7 : index
      %c0_45 = arith.constant 0 : index
      %46 = vector.load %arg7[%45, %c7_44, %c0_45] : memref<18x25x4xf32, #tpu.memory_space<vmem>>, vector<16x16x4xf32>
      %c0_46 = arith.constant 0 : index
      %c0_47 = arith.constant 0 : index
      %c24 = arith.constant 24 : index
      %47 = vector.load %arg8[%c0_46, %c0_47, %c24] : memref<16x16x128xf32, #tpu.memory_space<vmem>>, vector<16x16x4xf32>
      tpu.vector_store %arg8[%c0_46, %c0_47, %c24], %46 {strides = array<i32>} : memref<16x16x128xf32, #tpu.memory_space<vmem>>, vector<16x16x4xf32>,
      %c2_i32_48 = arith.constant 2 : i32
      %48 = arith.addi %19, %c2_i32_48 : i32
      %49 = arith.index_cast %48 : i32 to index
      %c8_49 = arith.constant 8 : index
      %c0_50 = arith.constant 0 : index
      %50 = vector.load %arg7[%49, %c8_49, %c0_50] : memref<18x25x4xf32, #tpu.memory_space<vmem>>, vector<16x16x4xf32>
      %c0_51 = arith.constant 0 : index
      %c0_52 = arith.constant 0 : index
      %c28 = arith.constant 28 : index
      %51 = vector.load %arg8[%c0_51, %c0_52, %c28] : memref<16x16x128xf32, #tpu.memory_space<vmem>>, vector<16x16x4xf32>
      tpu.vector_store %arg8[%c0_51, %c0_52, %c28], %50 {strides = array<i32>} : memref<16x16x128xf32, #tpu.memory_space<vmem>>, vector<16x16x4xf32>,
      %c2_i32_53 = arith.constant 2 : i32
      %52 = arith.addi %19, %c2_i32_53 : i32
      %53 = arith.index_cast %52 : i32 to index
      %c9_54 = arith.constant 9 : index
      %c0_55 = arith.constant 0 : index
      %54 = vector.load %arg7[%53, %c9_54, %c0_55] : memref<18x25x4xf32, #tpu.memory_space<vmem>>, vector<16x16x4xf32>
      %c0_56 = arith.constant 0 : index
      %c0_57 = arith.constant 0 : index
      %c32 = arith.constant 32 : index
      %55 = vector.load %arg8[%c0_56, %c0_57, %c32] : memref<16x16x128xf32, #tpu.memory_space<vmem>>, vector<16x16x4xf32>
      tpu.vector_store %arg8[%c0_56, %c0_57, %c32], %54 {strides = array<i32>} : memref<16x16x128xf32, #tpu.memory_space<vmem>>, vector<16x16x4xf32>,
    } else {
    }
    %c0 = arith.constant 0 : index
    %c0_4 = arith.constant 0 : index
    %c0_5 = arith.constant 0 : index
    %8 = vector.load %arg8[%c0, %c0_4, %c0_5] : memref<16x16x128xf32, #tpu.memory_space<vmem>>, vector<16x16x128xf32>
    %9 = vector.shape_cast %8 : vector<16x16x128xf32> to vector<256x128xf32>
    %c0_6 = arith.constant 0 : index
    %c0_7 = arith.constant 0 : index
    %10 = vector.load %arg4[%c0_6, %c0_7] : memref<128x128xf32, #tpu.memory_space<vmem>>, vector<128x128xf32>
    %cst = arith.constant dense<0.000000e+00> : vector<256x128xf32>
    %11 = tpu.matmul %9, %10, %cst {dimension_numbers = #tpu.dot_dimension_numbers<[1], [0], [0], [1], [0, 0, 1, 1], [], []>} : vector<256x128xf32>, vector<128x128xf32>, vector<256x128xf32> -> vector<256x128xf32>
    %c0_8 = arith.constant 0 : index
    %c0_9 = arith.constant 0 : index
    %12 = vector.load %arg5[%c0_8, %c0_9] : memref<1x128xf32, #tpu.memory_space<vmem>>, vector<1x128xf32>
    %13 = vector.broadcast %12 : vector<1x128xf32> to vector<256x128xf32>
    %14 = arith.addf %11, %13 : vector<256x128xf32>
    %15 = vector.shape_cast %14 : vector<256x128xf32> to vector<1x256x128xf32>
    %c0_10 = arith.constant 0 : index
    %c0_11 = arith.constant 0 : index
    %c0_12 = arith.constant 0 : index
    %16 = vector.load %arg6[%c0_10, %c0_11, %c0_12] : memref<1x256x128xf32, #tpu.memory_space<vmem>>, vector<1x256x128xf32>
    tpu.vector_store %arg6[%c0_10, %c0_11, %c0_12], %15 {strides = array<i32>} : memref<1x256x128xf32, #tpu.memory_space<vmem>>, vector<1x256x128xf32>,
    return
  }
  func.func @transform_0(%arg0: i32, %arg1: i32, %arg2: i32) -> (i32, i32, i32, i32) {
    %c0_i32 = arith.constant 0 : i32
    %c0_i32_0 = arith.constant 0 : i32
    %c0_i32_1 = arith.constant 0 : i32
    %c0_i32_2 = arith.constant 0 : i32
    return %arg0, %c0_i32, %c0_i32_0, %c0_i32_1 : i32, i32, i32, i32
  }
  func.func @transform_1(%arg0: i32, %arg1: i32, %arg2: i32) -> (i32, i32) {
    %c0_i32 = arith.constant 0 : i32
    %c0_i32_0 = arith.constant 0 : i32
    return %c0_i32, %arg2 : i32, i32
  }
  func.func @transform_2(%arg0: i32, %arg1: i32, %arg2: i32) -> (i32, i32) {
    %c0_i32 = arith.constant 0 : i32
    %c0_i32_0 = arith.constant 0 : i32
    return %c0_i32, %arg2 : i32, i32
  }
  func.func @transform_3(%arg0: i32, %arg1: i32, %arg2: i32) -> (i32, i32, i32) {
    %c0_i32 = arith.constant 0 : i32
    return %arg0, %arg1, %arg2 : i32, i32, i32
  }
}

</mosaic_0001>

<llo_original>
// kernel: tpu_custom_call.1
$region0: #{tpu_custom_call.1}
  #allocation0 [shape = 'u32[]', space=smem, size = 0x4, offset = 0x4, fixed_abs, tag = 'smem constant byte address 0x4 - core index']
  #allocation1 [shape = 'u32[72,128]{1,0:T(1,128)}', space=vmem, size = 0x9000, scoped, tag = 'internal scratch']
  #allocation2 [shape = 'f32[18,25,4]{2,1,0:T(8,128)}', space=vmem, size = 0x48000, scoped, tag = 'scratch operand']
  #allocation3 [shape = 'f32[16,16,128]{2,1,0:T(8,128)}', space=vmem, size = 0x20000, scoped, tag = 'scratch operand']
  %s0 = inlined_call_operand.vmem [shape: f32[2,16,16,4], index: 0, kind: input, shape index: {}]
  %s1 = inlined_call_operand.vmem [shape: f32[128,128], index: 1, kind: input, shape index: {}]
  %s2 = inlined_call_operand.vmem [shape: f32[1,128], index: 2, kind: input, shape index: {}]
  %s3 = inlined_call_operand.hbm [shape: f32[2,256,128], index: 3, kind: output, shape index: {}]
  %s4 = sld [smem:[#allocation0]]
  $region53: #{tpu_custom_call.1} parent=0
    _
  %s6 = ssub.s32 1, %s4
  %s7 = scalar_select 0, %s6, %s4
  $region1: #{tpu_custom_call.1} parent=0
    #allocation4 [shape = 'u8[262144]{0}', space=vmem, size = 0x40000, scoped, tag = 'output window, operand 0']
    #allocation5 [shape = 's32[2]{0}', space=sflag, size = 0x8, scoped, tag = 'scoped memory for tpu_custom_call.1']
    %8 = vsyncpa [#allocation5], 0
    %s9 = scalar_lea.sflag [#allocation5], 1
    %10 = vsyncpa %s9, 0
    loop: start=0, step=1, limit=4
    $region2: #{tpu_custom_call.1} parent=1 // loop_pre_header
      _
    $region3: #{tpu_custom_call.1} parent=1 // loop_header
      %s12 = sphi 0, %s16
      %p13 = scmp.ge.s32.totalorder %s12, 4
      %s19 = sphi 0, %s38
      %s20 = sphi 0, %s34
      %s21 = sphi 0, %s30
      %s22 = sphi 0, %s19
      %s23 = sphi 0, %s20
      %s24 = sphi 0, %s21
      %s25 = sphi 0, %s22
      %s26 = sphi 0, %s23
      %s27 = sphi 0, %s24
      %s41 = sphi 0, %s43
      %s44 = sphi 0, %s41
      %s45 = sphi 0, %s44
      %s61 = sphi 0, %s45
      %s67 = sphi 0, %s69
      %s70 = sphi 0, %s67
      %s71 = sphi 0, %s70
      %s87 = sphi 0, %s71
      %s93 = sphi 0, %s95
      %s96 = sphi 0, %s93
      %s97 = sphi 0, %s96
      %s113 = sphi 0, %s97
      %s123 = sphi 0, %s125
      %s126 = sphi 0, %s123
      %s127 = sphi 0, %s126
      %s143 = sphi 0, %s127
    $region4: #{tpu_custom_call.1} parent=1 // loop_header_branch
      %15 = sbr.rel (%p13) target = $region8
    $region5: #{tpu_custom_call.1} parent=1 // loop_body
      %s17 = ssub.s32 %s12, 1
      %s18 = ssub.s32 %s12, 2
      %s28 = sadd.s32 1, %s21
      %p29 = scmp.ge.s32.totalorder %s28, 1
      %s30 = scalar_select %p29, 0, %s28
      %s31 = sadd.s32 1, %s20
      %s32 = scalar_select %p29, %s31, %s20
      %p33 = scmp.ge.s32.totalorder %s32, 1
      %s34 = scalar_select %p33, 0, %s32
      %s35 = sadd.s32 1, %s19
      %s36 = scalar_select %p33, %s35, %s19
      %p37 = scmp.ge.s32.totalorder %s36, 2
      %s38 = scalar_select %p37, 0, %s36
      %s39 = ssub.s32 %s19, %s38
      %p40 = scmp.eq.s32.totalorder %s39, 0
      %s42 = sadd.s32 %s41, 1
      %s43 = scalar_select %p40, %s41, %s42
      %p46 = pneg %p40
      %p47 = scmp.eq.s32.totalorder %s12, 1
      %p48 = por %p46, %p47
      %p49 = scmp.ne.s32.totalorder %s41, %s44
      %p50 = scmp.eq.s32.totalorder %s12, 0
      %p51 = por %p49, %p50
      %p52 = scmp.ne.s32.totalorder %s41, %s44
      %p53 = scmp.eq.s32.totalorder %s17, 1
      %p54 = por %p52, %p53
      %p55 = scmp.ne.s32.totalorder %s44, %s45
      %p56 = scmp.eq.s32.totalorder %s17, 0
      %p57 = por %p55, %p56
      %p58 = scmp.ne.s32.totalorder %s44, %s45
      %p59 = scmp.eq.s32.totalorder %s18, 1
      %p60 = por %p58, %p59
      %p62 = scmp.ne.s32.totalorder %s45, %s61
      %p63 = scmp.eq.s32.totalorder %s18, 0
      %p64 = por %p62, %p63
      %s65 = ssub.s32 %s21, %s30
      %p66 = scmp.eq.s32.totalorder %s65, 0
      %s68 = sadd.s32 %s67, 1
      %s69 = scalar_select %p66, %s67, %s68
      %p72 = pneg %p66
      %p73 = scmp.eq.s32.totalorder %s12, 1
      %p74 = por %p72, %p73
      %p75 = scmp.ne.s32.totalorder %s67, %s70
      %p76 = scmp.eq.s32.totalorder %s12, 0
      %p77 = por %p75, %p76
      %p78 = scmp.ne.s32.totalorder %s67, %s70
      %p79 = scmp.eq.s32.totalorder %s17, 1
      %p80 = por %p78, %p79
      %p81 = scmp.ne.s32.totalorder %s70, %s71
      %p82 = scmp.eq.s32.totalorder %s17, 0
      %p83 = por %p81, %p82
      %p84 = scmp.ne.s32.totalorder %s70, %s71
      %p85 = scmp.eq.s32.totalorder %s18, 1
      %p86 = por %p84, %p85
      %p88 = scmp.ne.s32.totalorder %s71, %s87
      %p89 = scmp.eq.s32.totalorder %s18, 0
      %p90 = por %p88, %p89
      %s91 = ssub.s32 %s21, %s30
      %p92 = scmp.eq.s32.totalorder %s91, 0
      %s94 = sadd.s32 %s93, 1
      %s95 = scalar_select %p92, %s93, %s94
      %p98 = pneg %p92
      %p99 = scmp.eq.s32.totalorder %s12, 1
      %p100 = por %p98, %p99
      %p101 = scmp.ne.s32.totalorder %s93, %s96
      %p102 = scmp.eq.s32.totalorder %s12, 0
      %p103 = por %p101, %p102
      %p104 = scmp.ne.s32.totalorder %s93, %s96
      %p105 = scmp.eq.s32.totalorder %s17, 1
      %p106 = por %p104, %p105
      %p107 = scmp.ne.s32.totalorder %s96, %s97
      %p108 = scmp.eq.s32.totalorder %s17, 0
      %p109 = por %p107, %p108
      %p110 = scmp.ne.s32.totalorder %s96, %s97
      %p111 = scmp.eq.s32.totalorder %s18, 1
      %p112 = por %p110, %p111
      %p114 = scmp.ne.s32.totalorder %s97, %s113
      %p115 = scmp.eq.s32.totalorder %s18, 0
      %p116 = por %p114, %p115
      %s117 = ssub.s32 %s19, %s38
      %s118 = ssub.s32 %s20, %s34
      %s119 = sor.u32 %s117, %s118
      %s120 = ssub.s32 %s21, %s30
      %s121 = sor.u32 %s119, %s120
      %p122 = scmp.eq.s32.totalorder %s121, 0
      %s124 = sadd.s32 %s123, 1
      %s125 = scalar_select %p122, %s123, %s124
      %p128 = pneg %p122
      %p129 = scmp.eq.s32.totalorder %s12, 1
      %p130 = por %p128, %p129
      %p131 = scmp.ne.s32.totalorder %s123, %s126
      %p132 = scmp.eq.s32.totalorder %s12, 0
      %p133 = por %p131, %p132
      %p134 = scmp.ne.s32.totalorder %s123, %s126
      %p135 = scmp.eq.s32.totalorder %s17, 1
      %p136 = por %p134, %p135
      %p137 = scmp.ne.s32.totalorder %s126, %s127
      %p138 = scmp.eq.s32.totalorder %s17, 0
      %p139 = por %p137, %p138
      %p140 = scmp.ne.s32.totalorder %s126, %s127
      %p141 = scmp.eq.s32.totalorder %s18, 1
      %p142 = por %p140, %p141
      %p144 = scmp.ne.s32.totalorder %s127, %s143
      %p145 = scmp.eq.s32.totalorder %s18, 0
      %p146 = por %p144, %p145
      %p147 = scmp.le.s32.totalorder 1, %s12
      %p148 = scmp.lt.s32.totalorder %s12, 3
      %p149 = pnand %p147, %p148
      %p150 = pneg %p149
      // Predicated region
      $region9: #{tpu_custom_call.1} parent=5 // pred_check
        _
      $region10: #{tpu_custom_call.1} parent=5 // pred_check_branch
        %152 = sbr.rel (%p149) target = $region12
      $region11: #{tpu_custom_call.1} parent=5 // pred_region
        %s153 = ssub.s32 %s12, 1
        // Predicated region
        $region13: #{tpu_custom_call.1} parent=11 // pred_check
          %p154 = pneg %p83
        $region14: #{tpu_custom_call.1} parent=11 // pred_check_branch
          %156 = sbr.rel (%p154) target = $region16
        $region15: #{tpu_custom_call.1} parent=11 // pred_region
          %p157 = scmp.lt.s32.totalorder %s24, 0
          %s158 = scalar_select %p157, %s24, 0
          %s159 = smul.addr %s158, 8
          %s160 = scalar_lea.vmem %s1, %s159
        $region16: #{tpu_custom_call.1} parent=11 // pred_fallthru
          _
        // Predicated region
        $region17: #{tpu_custom_call.1} parent=11 // pred_check
          %p161 = pneg %p109
        $region18: #{tpu_custom_call.1} parent=11 // pred_check_branch
          %163 = sbr.rel (%p161) target = $region20
        $region19: #{tpu_custom_call.1} parent=11 // pred_region
          %p164 = scmp.lt.s32.totalorder %s24, 0
          %s165 = scalar_select %p164, %s24, 0
          %s166 = scalar_lea.vmem %s2, %s165
        $region20: #{tpu_custom_call.1} parent=11 // pred_fallthru
          _
      $region12: #{tpu_custom_call.1} parent=5 // pred_fallthru
        _
      %p167 = scmp.lt.s32.totalorder %s12, 2
      // Predicated region
      $region21: #{tpu_custom_call.1} parent=5 // pred_check
        %p168 = pneg %p167
      $region22: #{tpu_custom_call.1} parent=5 // pred_check_branch
        %170 = sbr.rel (%p168) target = $region24
      $region23: #{tpu_custom_call.1} parent=5 // pred_region
        // Predicated region
        $region25: #{tpu_custom_call.1} parent=23 // pred_check
          %p171 = pneg %p51
        $region26: #{tpu_custom_call.1} parent=23 // pred_check_branch
          %173 = sbr.rel (%p171) target = $region28
        $region27: #{tpu_custom_call.1} parent=23 // pred_region
          %p174 = scmp.lt.s32.totalorder %s19, 1
          %s175 = scalar_select %p174, %s19, 1
          %s176 = smul.addr %s175, 32
          %s177 = smul.addr %s176, 8
          %s178 = scalar_lea.vmem %s0, %s177
        $region28: #{tpu_custom_call.1} parent=23 // pred_fallthru
          _
      $region24: #{tpu_custom_call.1} parent=5 // pred_fallthru
        _
      %p179 = scmp.le.s32.totalorder 1, %s12
      %p180 = scmp.lt.s32.totalorder %s12, 3
      %p181 = pnand %p179, %p180
      %p182 = pneg %p181
      // Predicated region
      $region29: #{tpu_custom_call.1} parent=5 // pred_check
        _
      $region30: #{tpu_custom_call.1} parent=5 // pred_check_branch
        %184 = sbr.rel (%p181) target = $region32
      $region31: #{tpu_custom_call.1} parent=5 // pred_region
        %s185 = ssub.s32 %s12, 1
        %p186 = scmp.lt.s32.totalorder %s22, 1
        %s187 = scalar_select %p186, %s22, 1
        %s188 = smul.addr %s187, 32
        %s189 = smul.addr %s188, 8
        %s190 = scalar_lea.vmem %s0, %s189
        %p191 = pneg %p57
        %p192 = pneg %p54
        %p193 = scmp.lt.s32.totalorder %s24, 0
        %s194 = scalar_select %p193, %s24, 0
        %s195 = smul.addr %s194, 8
        %s196 = scalar_lea.vmem %s1, %s195
        %p197 = pneg %p83
        %p198 = pneg %p80
        %p199 = scmp.lt.s32.totalorder %s24, 0
        %s200 = scalar_select %p199, %s24, 0
        %s201 = scalar_lea.vmem %s2, %s200
        %p202 = pneg %p109
        %p203 = pneg %p106
        %p204 = pneg %p139
        %p205 = pneg %p136
        %s206 = sand.u32 %s126, 1
        %s207 = scalar_lea.sflag [#allocation5], %s206
        %s208 = sand.u32 %s126, 1
        %s209 = smul.addr %s208, 256
        %s210 = scalar_lea.vmem [#allocation4], %s209
        %p211 = scmp.lt.s32.totalorder %s22, 1
        %s212 = scalar_select %p211, %s22, 1
        %s213 = smul.addr %s212, 32
        %s214 = smul.addr %s213, 8
        %s215 = scalar_lea.vmem %s0, %s214
        %p216 = scmp.lt.s32.totalorder %s24, 0
        %s217 = scalar_select %p216, %s24, 0
        %s218 = smul.addr %s217, 8
        %s219 = scalar_lea.vmem %s1, %s218
        %p220 = scmp.lt.s32.totalorder %s24, 0
        %s221 = scalar_select %p220, %s24, 0
        %s222 = scalar_lea.vmem %s2, %s221
        %s223 = smul.u32 32, %s23
        %p224 = scmp.eq.s32.totalorder %s23, 0
        %p225 = scmp.eq.s32.totalorder %s24, 0
        %p226 = pnand %p224, %p225
        %p227 = pneg %p226
        // Predicated region
        $region33: #{tpu_custom_call.1} parent=31 // pred_check
          _
        $region34: #{tpu_custom_call.1} parent=31 // pred_check_branch
          %229 = sbr.rel (%p226) target = $region36
        $region35: #{tpu_custom_call.1} parent=31 // pred_region
          %vm230 = vcmask 31744
          %231 = vst.msk [vmem:[#allocation2 + $0x7] sm:$0xff] %vm230, 0.0
          %232 = vst.msk [vmem:[#allocation2 + $0xf] sm:$0xff] %vm230, 0.0
          %vm233 = vcmask 25600
          %234 = vst.msk [vmem:[#allocation2 + $0x17] sm:$0x3] %vm233, 0.0
          %s235 = scalar_lea.vmem [#allocation2], 544
          %236 = vst.msk [vmem:[%s235 + $0x7] sm:$0xff] %vm230, 0.0
          %237 = vst.msk [vmem:[%s235 + $0xf] sm:$0xff] %vm230, 0.0
          %238 = vst.msk [vmem:[%s235 + $0x17] sm:$0x3] %vm233, 0.0
          %s239 = scalar_lea.vmem [#allocation2], 32
          %vm240 = vcmask 24576
          %241 = vst.msk [vmem:[%s239 + $0x7] sm:$0x1] %vm240, 0.0
          %242 = vst.msk [vmem:[%s239 + $0x27] sm:$0x1] %vm240, 0.0
          %243 = vst.msk [vmem:[%s239 + $0x47] sm:$0x1] %vm240, 0.0
          %244 = vst.msk [vmem:[%s239 + $0x67] sm:$0x1] %vm240, 0.0
          %245 = vst.msk [vmem:[%s239 + $0x87] sm:$0x1] %vm240, 0.0
          %246 = vst.msk [vmem:[%s239 + $0xa7] sm:$0x1] %vm240, 0.0
          %247 = vst.msk [vmem:[%s239 + $0xc7] sm:$0x1] %vm240, 0.0
          %248 = vst.msk [vmem:[%s239 + $0xe7] sm:$0x1] %vm240, 0.0
          %249 = vst.msk [vmem:[%s239 + $0x107] sm:$0x1] %vm240, 0.0
          %250 = vst.msk [vmem:[%s239 + $0x127] sm:$0x1] %vm240, 0.0
          %251 = vst.msk [vmem:[%s239 + $0x147] sm:$0x1] %vm240, 0.0
          %252 = vst.msk [vmem:[%s239 + $0x167] sm:$0x1] %vm240, 0.0
          %253 = vst.msk [vmem:[%s239 + $0x187] sm:$0x1] %vm240, 0.0
          %254 = vst.msk [vmem:[%s239 + $0x1a7] sm:$0x1] %vm240, 0.0
          %255 = vst.msk [vmem:[%s239 + $0x1c7] sm:$0x1] %vm240, 0.0
          %256 = vst.msk [vmem:[%s239 + $0x1e7] sm:$0x1] %vm240, 0.0
          %257 = vst.msk [vmem:[%s239 + $0x18] sm:$0x1] %vm240, 0.0
          %258 = vst.msk [vmem:[%s239 + $0x38] sm:$0x1] %vm240, 0.0
          %259 = vst.msk [vmem:[%s239 + $0x58] sm:$0x1] %vm240, 0.0
          %260 = vst.msk [vmem:[%s239 + $0x78] sm:$0x1] %vm240, 0.0
          %261 = vst.msk [vmem:[%s239 + $0x98] sm:$0x1] %vm240, 0.0
          %262 = vst.msk [vmem:[%s239 + $0xb8] sm:$0x1] %vm240, 0.0
          %263 = vst.msk [vmem:[%s239 + $0xd8] sm:$0x1] %vm240, 0.0
          %264 = vst.msk [vmem:[%s239 + $0xf8] sm:$0x1] %vm240, 0.0
          %265 = vst.msk [vmem:[%s239 + $0x118] sm:$0x1] %vm240, 0.0
          %266 = vst.msk [vmem:[%s239 + $0x138] sm:$0x1] %vm240, 0.0
          %267 = vst.msk [vmem:[%s239 + $0x158] sm:$0x1] %vm240, 0.0
          %268 = vst.msk [vmem:[%s239 + $0x178] sm:$0x1] %vm240, 0.0
          %269 = vst.msk [vmem:[%s239 + $0x198] sm:$0x1] %vm240, 0.0
          %270 = vst.msk [vmem:[%s239 + $0x1b8] sm:$0x1] %vm240, 0.0
          %271 = vst.msk [vmem:[%s239 + $0x1d8] sm:$0x1] %vm240, 0.0
          %272 = vst.msk [vmem:[%s239 + $0x1f8] sm:$0x1] %vm240, 0.0
          %v273 = vld [vmem:[%s215] sm:$0xff]
          %v274 = vld [vmem:[%s215 + $0x8] sm:$0xff]
          %v275 = vld [vmem:[%s215 + $0x10] sm:$0xff]
          %v276 = vld [vmem:[%s215 + $0x18] sm:$0xff]
          %v277 = vld [vmem:[%s215 + $0x20] sm:$0xff]
          %v278 = vld [vmem:[%s215 + $0x28] sm:$0xff]
          %v279 = vld [vmem:[%s215 + $0x30] sm:$0xff]
          %v280 = vld [vmem:[%s215 + $0x38] sm:$0xff]
          %v281 = vld [vmem:[%s215 + $0x40] sm:$0xff]
          %v282 = vld [vmem:[%s215 + $0x48] sm:$0xff]
          %v283 = vld [vmem:[%s215 + $0x50] sm:$0xff]
          %v284 = vld [vmem:[%s215 + $0x58] sm:$0xff]
          %v285 = vld [vmem:[%s215 + $0x60] sm:$0xff]
          %v286 = vld [vmem:[%s215 + $0x68] sm:$0xff]
          %v287 = vld [vmem:[%s215 + $0x70] sm:$0xff]
          %v288 = vld [vmem:[%s215 + $0x78] sm:$0xff]
          %v289 = vld [vmem:[%s215 + $0x80] sm:$0xff]
          %v290 = vld [vmem:[%s215 + $0x88] sm:$0xff]
          %v291 = vld [vmem:[%s215 + $0x90] sm:$0xff]
          %v292 = vld [vmem:[%s215 + $0x98] sm:$0xff]
          %v293 = vld [vmem:[%s215 + $0xa0] sm:$0xff]
          %v294 = vld [vmem:[%s215 + $0xa8] sm:$0xff]
          %v295 = vld [vmem:[%s215 + $0xb0] sm:$0xff]
          %v296 = vld [vmem:[%s215 + $0xb8] sm:$0xff]
          %v297 = vld [vmem:[%s215 + $0xc0] sm:$0xff]
          %v298 = vld [vmem:[%s215 + $0xc8] sm:$0xff]
          %v299 = vld [vmem:[%s215 + $0xd0] sm:$0xff]
          %v300 = vld [vmem:[%s215 + $0xd8] sm:$0xff]
          %v301 = vld [vmem:[%s215 + $0xe0] sm:$0xff]
          %v302 = vld [vmem:[%s215 + $0xe8] sm:$0xff]
          %v303 = vld [vmem:[%s215 + $0xf0] sm:$0xff]
          %v304 = vld [vmem:[%s215 + $0xf8] sm:$0xff]
          %305 = vst.msk [vmem:[%s239 + $0x8] sm:$0xff] %vm230, %v273
          %306 = vst.msk [vmem:[%s239 + $0x10] sm:$0xff] %vm230, %v274
          %307 = vst.msk [vmem:[%s239 + $0x28] sm:$0xff] %vm230, %v275
          %308 = vst.msk [vmem:[%s239 + $0x30] sm:$0xff] %vm230, %v276
          %309 = vst.msk [vmem:[%s239 + $0x48] sm:$0xff] %vm230, %v277
          %310 = vst.msk [vmem:[%s239 + $0x50] sm:$0xff] %vm230, %v278
          %311 = vst.msk [vmem:[%s239 + $0x68] sm:$0xff] %vm230, %v279
          %312 = vst.msk [vmem:[%s239 + $0x70] sm:$0xff] %vm230, %v280
          %313 = vst.msk [vmem:[%s239 + $0x88] sm:$0xff] %vm230, %v281
          %314 = vst.msk [vmem:[%s239 + $0x90] sm:$0xff] %vm230, %v282
          %315 = vst.msk [vmem:[%s239 + $0xa8] sm:$0xff] %vm230, %v283
          %316 = vst.msk [vmem:[%s239 + $0xb0] sm:$0xff] %vm230, %v284
          %317 = vst.msk [vmem:[%s239 + $0xc8] sm:$0xff] %vm230, %v285
          %318 = vst.msk [vmem:[%s239 + $0xd0] sm:$0xff] %vm230, %v286
          %319 = vst.msk [vmem:[%s239 + $0xe8] sm:$0xff] %vm230, %v287
          %320 = vst.msk [vmem:[%s239 + $0xf0] sm:$0xff] %vm230, %v288
          %321 = vst.msk [vmem:[%s239 + $0x108] sm:$0xff] %vm230, %v289
          %322 = vst.msk [vmem:[%s239 + $0x110] sm:$0xff] %vm230, %v290
          %323 = vst.msk [vmem:[%s239 + $0x128] sm:$0xff] %vm230, %v291
          %324 = vst.msk [vmem:[%s239 + $0x130] sm:$0xff] %vm230, %v292
          %325 = vst.msk [vmem:[%s239 + $0x148] sm:$0xff] %vm230, %v293
          %326 = vst.msk [vmem:[%s239 + $0x150] sm:$0xff] %vm230, %v294
          %327 = vst.msk [vmem:[%s239 + $0x168] sm:$0xff] %vm230, %v295
          %328 = vst.msk [vmem:[%s239 + $0x170] sm:$0xff] %vm230, %v296
          %329 = vst.msk [vmem:[%s239 + $0x188] sm:$0xff] %vm230, %v297
          %330 = vst.msk [vmem:[%s239 + $0x190] sm:$0xff] %vm230, %v298
          %331 = vst.msk [vmem:[%s239 + $0x1a8] sm:$0xff] %vm230, %v299
          %332 = vst.msk [vmem:[%s239 + $0x1b0] sm:$0xff] %vm230, %v300
          %333 = vst.msk [vmem:[%s239 + $0x1c8] sm:$0xff] %vm230, %v301
          %334 = vst.msk [vmem:[%s239 + $0x1d0] sm:$0xff] %vm230, %v302
          %335 = vst.msk [vmem:[%s239 + $0x1e8] sm:$0xff] %vm230, %v303
          %336 = vst.msk [vmem:[%s239 + $0x1f0] sm:$0xff] %vm230, %v304
        $region36: #{tpu_custom_call.1} parent=31 // pred_fallthru
          _
        // Predicated region
        $region37: #{tpu_custom_call.1} parent=31 // pred_check
          %p337 = pneg %p225
        $region38: #{tpu_custom_call.1} parent=31 // pred_check_branch
          %339 = sbr.rel (%p337) target = $region40
        $region39: #{tpu_custom_call.1} parent=31 // pred_region
          %vm340 = vcmask 1047840
          %341 = vst.msk [vmem:[#allocation3] sm:$0xff] %vm340, 0.0
          %342 = vst.msk [vmem:[#allocation3 + $0x8] sm:$0xff] %vm340, 0.0
          %343 = vst.msk [vmem:[#allocation3 + $0x10] sm:$0xff] %vm340, 0.0
          %344 = vst.msk [vmem:[#allocation3 + $0x18] sm:$0xff] %vm340, 0.0
          %345 = vst.msk [vmem:[#allocation3 + $0x20] sm:$0xff] %vm340, 0.0
          %346 = vst.msk [vmem:[#allocation3 + $0x28] sm:$0xff] %vm340, 0.0
          %347 = vst.msk [vmem:[#allocation3 + $0x30] sm:$0xff] %vm340, 0.0
          %348 = vst.msk [vmem:[#allocation3 + $0x38] sm:$0xff] %vm340, 0.0
          %349 = vst.msk [vmem:[#allocation3 + $0x40] sm:$0xff] %vm340, 0.0
          %350 = vst.msk [vmem:[#allocation3 + $0x48] sm:$0xff] %vm340, 0.0
          %351 = vst.msk [vmem:[#allocation3 + $0x50] sm:$0xff] %vm340, 0.0
          %352 = vst.msk [vmem:[#allocation3 + $0x58] sm:$0xff] %vm340, 0.0
          %353 = vst.msk [vmem:[#allocation3 + $0x60] sm:$0xff] %vm340, 0.0
          %354 = vst.msk [vmem:[#allocation3 + $0x68] sm:$0xff] %vm340, 0.0
          %355 = vst.msk [vmem:[#allocation3 + $0x70] sm:$0xff] %vm340, 0.0
          %356 = vst.msk [vmem:[#allocation3 + $0x78] sm:$0xff] %vm340, 0.0
          %357 = vst.msk [vmem:[#allocation3 + $0x80] sm:$0xff] %vm340, 0.0
          %358 = vst.msk [vmem:[#allocation3 + $0x88] sm:$0xff] %vm340, 0.0
          %359 = vst.msk [vmem:[#allocation3 + $0x90] sm:$0xff] %vm340, 0.0
          %360 = vst.msk [vmem:[#allocation3 + $0x98] sm:$0xff] %vm340, 0.0
          %361 = vst.msk [vmem:[#allocation3 + $0xa0] sm:$0xff] %vm340, 0.0
          %362 = vst.msk [vmem:[#allocation3 + $0xa8] sm:$0xff] %vm340, 0.0
          %363 = vst.msk [vmem:[#allocation3 + $0xb0] sm:$0xff] %vm340, 0.0
          %364 = vst.msk [vmem:[#allocation3 + $0xb8] sm:$0xff] %vm340, 0.0
          %365 = vst.msk [vmem:[#allocation3 + $0xc0] sm:$0xff] %vm340, 0.0
          %366 = vst.msk [vmem:[#allocation3 + $0xc8] sm:$0xff] %vm340, 0.0
          %367 = vst.msk [vmem:[#allocation3 + $0xd0] sm:$0xff] %vm340, 0.0
          %368 = vst.msk [vmem:[#allocation3 + $0xd8] sm:$0xff] %vm340, 0.0
          %369 = vst.msk [vmem:[#allocation3 + $0xe0] sm:$0xff] %vm340, 0.0
          %370 = vst.msk [vmem:[#allocation3 + $0xe8] sm:$0xff] %vm340, 0.0
          %371 = vst.msk [vmem:[#allocation3 + $0xf0] sm:$0xff] %vm340, 0.0
          %372 = vst.msk [vmem:[#allocation3 + $0xf8] sm:$0xff] %vm340, 0.0
          %s373 = smul.u32 %s23, 16
          %s374 = smul.u32 %s373, 32
          %s375 = scalar_lea.vmem [#allocation2], %s374
          %v376 = vld [vmem:[%s375 + $0x7] sm:$0xff]
          %v377 = vld [vmem:[%s375 + $0xf] sm:$0xff]
          %v378 = vld [vmem:[%s375 + $0x27] sm:$0xff]
          %v379 = vld [vmem:[%s375 + $0x2f] sm:$0xff]
          %v380 = vld [vmem:[%s375 + $0x47] sm:$0xff]
          %v381 = vld [vmem:[%s375 + $0x4f] sm:$0xff]
          %v382 = vld [vmem:[%s375 + $0x67] sm:$0xff]
          %v383 = vld [vmem:[%s375 + $0x6f] sm:$0xff]
          %v384 = vld [vmem:[%s375 + $0x87] sm:$0xff]
          %v385 = vld [vmem:[%s375 + $0x8f] sm:$0xff]
          %v386 = vld [vmem:[%s375 + $0xa7] sm:$0xff]
          %v387 = vld [vmem:[%s375 + $0xaf] sm:$0xff]
          %v388 = vld [vmem:[%s375 + $0xc7] sm:$0xff]
          %v389 = vld [vmem:[%s375 + $0xcf] sm:$0xff]
          %v390 = vld [vmem:[%s375 + $0xe7] sm:$0xff]
          %v391 = vld [vmem:[%s375 + $0xef] sm:$0xff]
          %v392 = vld [vmem:[%s375 + $0x107] sm:$0xff]
          %v393 = vld [vmem:[%s375 + $0x10f] sm:$0xff]
          %v394 = vld [vmem:[%s375 + $0x127] sm:$0xff]
          %v395 = vld [vmem:[%s375 + $0x12f] sm:$0xff]
          %v396 = vld [vmem:[%s375 + $0x147] sm:$0xff]
          %v397 = vld [vmem:[%s375 + $0x14f] sm:$0xff]
          %v398 = vld [vmem:[%s375 + $0x167] sm:$0xff]
          %v399 = vld [vmem:[%s375 + $0x16f] sm:$0xff]
          %v400 = vld [vmem:[%s375 + $0x187] sm:$0xff]
          %v401 = vld [vmem:[%s375 + $0x18f] sm:$0xff]
          %v402 = vld [vmem:[%s375 + $0x1a7] sm:$0xff]
          %v403 = vld [vmem:[%s375 + $0x1af] sm:$0xff]
          %v404 = vld [vmem:[%s375 + $0x1c7] sm:$0xff]
          %v405 = vld [vmem:[%s375 + $0x1cf] sm:$0xff]
          %v406 = vld [vmem:[%s375 + $0x1e7] sm:$0xff]
          %v407 = vld [vmem:[%s375 + $0x1ef] sm:$0xff]
          %vm408 = vcmask 31744
          %409 = vst.msk [vmem:[#allocation3] sm:$0xff] %vm408, %v376
          %410 = vst.msk [vmem:[#allocation3 + $0x8] sm:$0xff] %vm408, %v377
          %411 = vst.msk [vmem:[#allocation3 + $0x10] sm:$0xff] %vm408, %v378
          %412 = vst.msk [vmem:[#allocation3 + $0x18] sm:$0xff] %vm408, %v379
          %413 = vst.msk [vmem:[#allocation3 + $0x20] sm:$0xff] %vm408, %v380
          %414 = vst.msk [vmem:[#allocation3 + $0x28] sm:$0xff] %vm408, %v381
          %415 = vst.msk [vmem:[#allocation3 + $0x30] sm:$0xff] %vm408, %v382
          %416 = vst.msk [vmem:[#allocation3 + $0x38] sm:$0xff] %vm408, %v383
          %417 = vst.msk [vmem:[#allocation3 + $0x40] sm:$0xff] %vm408, %v384
          %418 = vst.msk [vmem:[#allocation3 + $0x48] sm:$0xff] %vm408, %v385
          %419 = vst.msk [vmem:[#allocation3 + $0x50] sm:$0xff] %vm408, %v386
          %420 = vst.msk [vmem:[#allocation3 + $0x58] sm:$0xff] %vm408, %v387
          %421 = vst.msk [vmem:[#allocation3 + $0x60] sm:$0xff] %vm408, %v388
          %422 = vst.msk [vmem:[#allocation3 + $0x68] sm:$0xff] %vm408, %v389
          %423 = vst.msk [vmem:[#allocation3 + $0x70] sm:$0xff] %vm408, %v390
          %424 = vst.msk [vmem:[#allocation3 + $0x78] sm:$0xff] %vm408, %v391
          %425 = vst.msk [vmem:[#allocation3 + $0x80] sm:$0xff] %vm408, %v392
          %426 = vst.msk [vmem:[#allocation3 + $0x88] sm:$0xff] %vm408, %v393
          %427 = vst.msk [vmem:[#allocation3 + $0x90] sm:$0xff] %vm408, %v394
          %428 = vst.msk [vmem:[#allocation3 + $0x98] sm:$0xff] %vm408, %v395
          %429 = vst.msk [vmem:[#allocation3 + $0xa0] sm:$0xff] %vm408, %v396
          %430 = vst.msk [vmem:[#allocation3 + $0xa8] sm:$0xff] %vm408, %v397
          %431 = vst.msk [vmem:[#allocation3 + $0xb0] sm:$0xff] %vm408, %v398
          %432 = vst.msk [vmem:[#allocation3 + $0xb8] sm:$0xff] %vm408, %v399
          %433 = vst.msk [vmem:[#allocation3 + $0xc0] sm:$0xff] %vm408, %v400
          %434 = vst.msk [vmem:[#allocation3 + $0xc8] sm:$0xff] %vm408, %v401
          %435 = vst.msk [vmem:[#allocation3 + $0xd0] sm:$0xff] %vm408, %v402
          %436 = vst.msk [vmem:[#allocation3 + $0xd8] sm:$0xff] %vm408, %v403
          %437 = vst.msk [vmem:[#allocation3 + $0xe0] sm:$0xff] %vm408, %v404
          %438 = vst.msk [vmem:[#allocation3 + $0xe8] sm:$0xff] %vm408, %v405
          %439 = vst.msk [vmem:[#allocation3 + $0xf0] sm:$0xff] %vm408, %v406
          %440 = vst.msk [vmem:[#allocation3 + $0xf8] sm:$0xff] %vm408, %v407
          %v441 = vld [vmem:[%s375 + $0x8] sm:$0xff]
          %v442 = vld [vmem:[%s375 + $0x10] sm:$0xff]
          %v443 = vld [vmem:[%s375 + $0x28] sm:$0xff]
          %v444 = vld [vmem:[%s375 + $0x30] sm:$0xff]
          %v445 = vld [vmem:[%s375 + $0x48] sm:$0xff]
          %v446 = vld [vmem:[%s375 + $0x50] sm:$0xff]
          %v447 = vld [vmem:[%s375 + $0x68] sm:$0xff]
          %v448 = vld [vmem:[%s375 + $0x70] sm:$0xff]
          %v449 = vld [vmem:[%s375 + $0x88] sm:$0xff]
          %v450 = vld [vmem:[%s375 + $0x90] sm:$0xff]
          %v451 = vld [vmem:[%s375 + $0xa8] sm:$0xff]
          %v452 = vld [vmem:[%s375 + $0xb0] sm:$0xff]
          %v453 = vld [vmem:[%s375 + $0xc8] sm:$0xff]
          %v454 = vld [vmem:[%s375 + $0xd0] sm:$0xff]
          %v455 = vld [vmem:[%s375 + $0xe8] sm:$0xff]
          %v456 = vld [vmem:[%s375 + $0xf0] sm:$0xff]
          %v457 = vld [vmem:[%s375 + $0x108] sm:$0xff]
          %v458 = vld [vmem:[%s375 + $0x110] sm:$0xff]
          %v459 = vld [vmem:[%s375 + $0x128] sm:$0xff]
          %v460 = vld [vmem:[%s375 + $0x130] sm:$0xff]
          %v461 = vld [vmem:[%s375 + $0x148] sm:$0xff]
          %v462 = vld [vmem:[%s375 + $0x150] sm:$0xff]
          %v463 = vld [vmem:[%s375 + $0x168] sm:$0xff]
          %v464 = vld [vmem:[%s375 + $0x170] sm:$0xff]
          %v465 = vld [vmem:[%s375 + $0x188] sm:$0xff]
          %v466 = vld [vmem:[%s375 + $0x190] sm:$0xff]
          %v467 = vld [vmem:[%s375 + $0x1a8] sm:$0xff]
          %v468 = vld [vmem:[%s375 + $0x1b0] sm:$0xff]
          %v469 = vld [vmem:[%s375 + $0x1c8] sm:$0xff]
          %v470 = vld [vmem:[%s375 + $0x1d0] sm:$0xff]
          %v471 = vld [vmem:[%s375 + $0x1e8] sm:$0xff]
          %v472 = vld [vmem:[%s375 + $0x1f0] sm:$0xff]
          %505 = vrot.lane.b32.xlu0 %v441, 4
          %v506 = vpop.permute.xlu0 %505
          %507 = vrot.lane.b32.xlu0 %v442, 4
          %v508 = vpop.permute.xlu0 %507
          %509 = vrot.lane.b32.xlu0 %v443, 4
          %v510 = vpop.permute.xlu0 %509
          %511 = vrot.lane.b32.xlu0 %v444, 4
          %v512 = vpop.permute.xlu0 %511
          %513 = vrot.lane.b32.xlu0 %v445, 4
          %v514 = vpop.permute.xlu0 %513
          %515 = vrot.lane.b32.xlu0 %v446, 4
          %v516 = vpop.permute.xlu0 %515
          %517 = vrot.lane.b32.xlu0 %v447, 4
          %v518 = vpop.permute.xlu0 %517
          %519 = vrot.lane.b32.xlu0 %v448, 4
          %v520 = vpop.permute.xlu0 %519
          %521 = vrot.lane.b32.xlu0 %v449, 4
          %v522 = vpop.permute.xlu0 %521
          %523 = vrot.lane.b32.xlu0 %v450, 4
          %v524 = vpop.permute.xlu0 %523
          %525 = vrot.lane.b32.xlu0 %v451, 4
          %v526 = vpop.permute.xlu0 %525
          %527 = vrot.lane.b32.xlu0 %v452, 4
          %v528 = vpop.permute.xlu0 %527
          %529 = vrot.lane.b32.xlu0 %v453, 4
          %v530 = vpop.permute.xlu0 %529
          %531 = vrot.lane.b32.xlu0 %v454, 4
          %v532 = vpop.permute.xlu0 %531
          %533 = vrot.lane.b32.xlu0 %v455, 4
          %v534 = vpop.permute.xlu0 %533
          %535 = vrot.lane.b32.xlu0 %v456, 4
          %v536 = vpop.permute.xlu0 %535
          %537 = vrot.lane.b32.xlu0 %v457, 4
          %v538 = vpop.permute.xlu0 %537
          %539 = vrot.lane.b32.xlu0 %v458, 4
          %v540 = vpop.permute.xlu0 %539
          %541 = vrot.lane.b32.xlu0 %v459, 4
          %v542 = vpop.permute.xlu0 %541
          %543 = vrot.lane.b32.xlu0 %v460, 4
          %v544 = vpop.permute.xlu0 %543
          %545 = vrot.lane.b32.xlu0 %v461, 4
          %v546 = vpop.permute.xlu0 %545
          %547 = vrot.lane.b32.xlu0 %v462, 4
          %v548 = vpop.permute.xlu0 %547
          %549 = vrot.lane.b32.xlu0 %v463, 4
          %v550 = vpop.permute.xlu0 %549
          %551 = vrot.lane.b32.xlu0 %v464, 4
          %v552 = vpop.permute.xlu0 %551
          %553 = vrot.lane.b32.xlu0 %v465, 4
          %v554 = vpop.permute.xlu0 %553
          %555 = vrot.lane.b32.xlu0 %v466, 4
          %v556 = vpop.permute.xlu0 %555
          %557 = vrot.lane.b32.xlu0 %v467, 4
          %v558 = vpop.permute.xlu0 %557
          %559 = vrot.lane.b32.xlu0 %v468, 4
          %v560 = vpop.permute.xlu0 %559
          %561 = vrot.lane.b32.xlu0 %v469, 4
          %v562 = vpop.permute.xlu0 %561
          %563 = vrot.lane.b32.xlu0 %v470, 4
          %v564 = vpop.permute.xlu0 %563
          %565 = vrot.lane.b32.xlu0 %v471, 4
          %v566 = vpop.permute.xlu0 %565
          %567 = vrot.lane.b32.xlu0 %v472, 4
          %v568 = vpop.permute.xlu0 %567
          %vm601 = vcmask 64544
          %602 = vst.msk [vmem:[#allocation3] sm:$0xff] %vm601, %v506
          %603 = vst.msk [vmem:[#allocation3 + $0x8] sm:$0xff] %vm601, %v508
          %604 = vst.msk [vmem:[#allocation3 + $0x10] sm:$0xff] %vm601, %v510
          %605 = vst.msk [vmem:[#allocation3 + $0x18] sm:$0xff] %vm601, %v512
          %606 = vst.msk [vmem:[#allocation3 + $0x20] sm:$0xff] %vm601, %v514
          %607 = vst.msk [vmem:[#allocation3 + $0x28] sm:$0xff] %vm601, %v516
          %608 = vst.msk [vmem:[#allocation3 + $0x30] sm:$0xff] %vm601, %v518
          %609 = vst.msk [vmem:[#allocation3 + $0x38] sm:$0xff] %vm601, %v520
          %610 = vst.msk [vmem:[#allocation3 + $0x40] sm:$0xff] %vm601, %v522
          %611 = vst.msk [vmem:[#allocation3 + $0x48] sm:$0xff] %vm601, %v524
          %612 = vst.msk [vmem:[#allocation3 + $0x50] sm:$0xff] %vm601, %v526
          %613 = vst.msk [vmem:[#allocation3 + $0x58] sm:$0xff] %vm601, %v528
          %614 = vst.msk [vmem:[#allocation3 + $0x60] sm:$0xff] %vm601, %v530
          %615 = vst.msk [vmem:[#allocation3 + $0x68] sm:$0xff] %vm601, %v532
          %616 = vst.msk [vmem:[#allocation3 + $0x70] sm:$0xff] %vm601, %v534
          %617 = vst.msk [vmem:[#allocation3 + $0x78] sm:$0xff] %vm601, %v536
          %618 = vst.msk [vmem:[#allocation3 + $0x80] sm:$0xff] %vm601, %v538
          %619 = vst.msk [vmem:[#allocation3 + $0x88] sm:$0xff] %vm601, %v540
          %620 = vst.msk [vmem:[#allocation3 + $0x90] sm:$0xff] %vm601, %v542
          %621 = vst.msk [vmem:[#allocation3 + $0x98] sm:$0xff] %vm601, %v544
          %622 = vst.msk [vmem:[#allocation3 + $0xa0] sm:$0xff] %vm601, %v546
          %623 = vst.msk [vmem:[#allocation3 + $0xa8] sm:$0xff] %vm601, %v548
          %624 = vst.msk [vmem:[#allocation3 + $0xb0] sm:$0xff] %vm601, %v550
          %625 = vst.msk [vmem:[#allocation3 + $0xb8] sm:$0xff] %vm601, %v552
          %626 = vst.msk [vmem:[#allocation3 + $0xc0] sm:$0xff] %vm601, %v554
          %627 = vst.msk [vmem:[#allocation3 + $0xc8] sm:$0xff] %vm601, %v556
          %628 = vst.msk [vmem:[#allocation3 + $0xd0] sm:$0xff] %vm601, %v558
          %629 = vst.msk [vmem:[#allocation3 + $0xd8] sm:$0xff] %vm601, %v560
          %630 = vst.msk [vmem:[#allocation3 + $0xe0] sm:$0xff] %vm601, %v562
          %631 = vst.msk [vmem:[#allocation3 + $0xe8] sm:$0xff] %vm601, %v564
          %632 = vst.msk [vmem:[#allocation3 + $0xf0] sm:$0xff] %vm601, %v566
          %633 = vst.msk [vmem:[#allocation3 + $0xf8] sm:$0xff] %vm601, %v568
          %v634 = vld [vmem:[%s375 + $0x9] sm:$0xff]
          %v635 = vld [vmem:[%s375 + $0x11] sm:$0xff]
          %v636 = vld [vmem:[%s375 + $0x29] sm:$0xff]
          %v637 = vld [vmem:[%s375 + $0x31] sm:$0xff]
          %v638 = vld [vmem:[%s375 + $0x49] sm:$0xff]
          %v639 = vld [vmem:[%s375 + $0x51] sm:$0xff]
          %v640 = vld [vmem:[%s375 + $0x69] sm:$0xff]
          %v641 = vld [vmem:[%s375 + $0x71] sm:$0xff]
          %v642 = vld [vmem:[%s375 + $0x89] sm:$0xff]
          %v643 = vld [vmem:[%s375 + $0x91] sm:$0xff]
          %v644 = vld [vmem:[%s375 + $0xa9] sm:$0xff]
          %v645 = vld [vmem:[%s375 + $0xb1] sm:$0xff]
          %v646 = vld [vmem:[%s375 + $0xc9] sm:$0xff]
          %v647 = vld [vmem:[%s375 + $0xd1] sm:$0xff]
          %v648 = vld [vmem:[%s375 + $0xe9] sm:$0xff]
          %v649 = vld [vmem:[%s375 + $0xf1] sm:$0xff]
          %v650 = vld [vmem:[%s375 + $0x109] sm:$0xff]
          %v651 = vld [vmem:[%s375 + $0x111] sm:$0xff]
          %v652 = vld [vmem:[%s375 + $0x129] sm:$0xff]
          %v653 = vld [vmem:[%s375 + $0x131] sm:$0xff]
          %v654 = vld [vmem:[%s375 + $0x149] sm:$0xff]
          %v655 = vld [vmem:[%s375 + $0x151] sm:$0xff]
          %v656 = vld [vmem:[%s375 + $0x169] sm:$0xff]
          %v657 = vld [vmem:[%s375 + $0x171] sm:$0xff]
          %v658 = vld [vmem:[%s375 + $0x189] sm:$0xff]
          %v659 = vld [vmem:[%s375 + $0x191] sm:$0xff]
          %v660 = vld [vmem:[%s375 + $0x1a9] sm:$0xff]
          %v661 = vld [vmem:[%s375 + $0x1b1] sm:$0xff]
          %v662 = vld [vmem:[%s375 + $0x1c9] sm:$0xff]
          %v663 = vld [vmem:[%s375 + $0x1d1] sm:$0xff]
          %v664 = vld [vmem:[%s375 + $0x1e9] sm:$0xff]
          %v665 = vld [vmem:[%s375 + $0x1f1] sm:$0xff]
          %698 = vrot.lane.b32.xlu0 %v634, 8
          %v699 = vpop.permute.xlu0 %698
          %700 = vrot.lane.b32.xlu0 %v635, 8
          %v701 = vpop.permute.xlu0 %700
          %702 = vrot.lane.b32.xlu0 %v636, 8
          %v703 = vpop.permute.xlu0 %702
          %704 = vrot.lane.b32.xlu0 %v637, 8
          %v705 = vpop.permute.xlu0 %704
          %706 = vrot.lane.b32.xlu0 %v638, 8
          %v707 = vpop.permute.xlu0 %706
          %708 = vrot.lane.b32.xlu0 %v639, 8
          %v709 = vpop.permute.xlu0 %708
          %710 = vrot.lane.b32.xlu0 %v640, 8
          %v711 = vpop.permute.xlu0 %710
          %712 = vrot.lane.b32.xlu0 %v641, 8
          %v713 = vpop.permute.xlu0 %712
          %714 = vrot.lane.b32.xlu0 %v642, 8
          %v715 = vpop.permute.xlu0 %714
          %716 = vrot.lane.b32.xlu0 %v643, 8
          %v717 = vpop.permute.xlu0 %716
          %718 = vrot.lane.b32.xlu0 %v644, 8
          %v719 = vpop.permute.xlu0 %718
          %720 = vrot.lane.b32.xlu0 %v645, 8
          %v721 = vpop.permute.xlu0 %720
          %722 = vrot.lane.b32.xlu0 %v646, 8
          %v723 = vpop.permute.xlu0 %722
          %724 = vrot.lane.b32.xlu0 %v647, 8
          %v725 = vpop.permute.xlu0 %724
          %726 = vrot.lane.b32.xlu0 %v648, 8
          %v727 = vpop.permute.xlu0 %726
          %728 = vrot.lane.b32.xlu0 %v649, 8
          %v729 = vpop.permute.xlu0 %728
          %730 = vrot.lane.b32.xlu0 %v650, 8
          %v731 = vpop.permute.xlu0 %730
          %732 = vrot.lane.b32.xlu0 %v651, 8
          %v733 = vpop.permute.xlu0 %732
          %734 = vrot.lane.b32.xlu0 %v652, 8
          %v735 = vpop.permute.xlu0 %734
          %736 = vrot.lane.b32.xlu0 %v653, 8
          %v737 = vpop.permute.xlu0 %736
          %738 = vrot.lane.b32.xlu0 %v654, 8
          %v739 = vpop.permute.xlu0 %738
          %740 = vrot.lane.b32.xlu0 %v655, 8
          %v741 = vpop.permute.xlu0 %740
          %742 = vrot.lane.b32.xlu0 %v656, 8
          %v743 = vpop.permute.xlu0 %742
          %744 = vrot.lane.b32.xlu0 %v657, 8
          %v745 = vpop.permute.xlu0 %744
          %746 = vrot.lane.b32.xlu0 %v658, 8
          %v747 = vpop.permute.xlu0 %746
          %748 = vrot.lane.b32.xlu0 %v659, 8
          %v749 = vpop.permute.xlu0 %748
          %750 = vrot.lane.b32.xlu0 %v660, 8
          %v751 = vpop.permute.xlu0 %750
          %752 = vrot.lane.b32.xlu0 %v661, 8
          %v753 = vpop.permute.xlu0 %752
          %754 = vrot.lane.b32.xlu0 %v662, 8
          %v755 = vpop.permute.xlu0 %754
          %756 = vrot.lane.b32.xlu0 %v663, 8
          %v757 = vpop.permute.xlu0 %756
          %758 = vrot.lane.b32.xlu0 %v664, 8
          %v759 = vpop.permute.xlu0 %758
          %760 = vrot.lane.b32.xlu0 %v665, 8
          %v761 = vpop.permute.xlu0 %760
          %vm794 = vcmask 97344
          %795 = vst.msk [vmem:[#allocation3] sm:$0xff] %vm794, %v699
          %796 = vst.msk [vmem:[#allocation3 + $0x8] sm:$0xff] %vm794, %v701
          %797 = vst.msk [vmem:[#allocation3 + $0x10] sm:$0xff] %vm794, %v703
          %798 = vst.msk [vmem:[#allocation3 + $0x18] sm:$0xff] %vm794, %v705
          %799 = vst.msk [vmem:[#allocation3 + $0x20] sm:$0xff] %vm794, %v707
          %800 = vst.msk [vmem:[#allocation3 + $0x28] sm:$0xff] %vm794, %v709
          %801 = vst.msk [vmem:[#allocation3 + $0x30] sm:$0xff] %vm794, %v711
          %802 = vst.msk [vmem:[#allocation3 + $0x38] sm:$0xff] %vm794, %v713
          %803 = vst.msk [vmem:[#allocation3 + $0x40] sm:$0xff] %vm794, %v715
          %804 = vst.msk [vmem:[#allocation3 + $0x48] sm:$0xff] %vm794, %v717
          %805 = vst.msk [vmem:[#allocation3 + $0x50] sm:$0xff] %vm794, %v719
          %806 = vst.msk [vmem:[#allocation3 + $0x58] sm:$0xff] %vm794, %v721
          %807 = vst.msk [vmem:[#allocation3 + $0x60] sm:$0xff] %vm794, %v723
          %808 = vst.msk [vmem:[#allocation3 + $0x68] sm:$0xff] %vm794, %v725
          %809 = vst.msk [vmem:[#allocation3 + $0x70] sm:$0xff] %vm794, %v727
          %810 = vst.msk [vmem:[#allocation3 + $0x78] sm:$0xff] %vm794, %v729
          %811 = vst.msk [vmem:[#allocation3 + $0x80] sm:$0xff] %vm794, %v731
          %812 = vst.msk [vmem:[#allocation3 + $0x88] sm:$0xff] %vm794, %v733
          %813 = vst.msk [vmem:[#allocation3 + $0x90] sm:$0xff] %vm794, %v735
          %814 = vst.msk [vmem:[#allocation3 + $0x98] sm:$0xff] %vm794, %v737
          %815 = vst.msk [vmem:[#allocation3 + $0xa0] sm:$0xff] %vm794, %v739
          %816 = vst.msk [vmem:[#allocation3 + $0xa8] sm:$0xff] %vm794, %v741
          %817 = vst.msk [vmem:[#allocation3 + $0xb0] sm:$0xff] %vm794, %v743
          %818 = vst.msk [vmem:[#allocation3 + $0xb8] sm:$0xff] %vm794, %v745
          %819 = vst.msk [vmem:[#allocation3 + $0xc0] sm:$0xff] %vm794, %v747
          %820 = vst.msk [vmem:[#allocation3 + $0xc8] sm:$0xff] %vm794, %v749
          %821 = vst.msk [vmem:[#allocation3 + $0xd0] sm:$0xff] %vm794, %v751
          %822 = vst.msk [vmem:[#allocation3 + $0xd8] sm:$0xff] %vm794, %v753
          %823 = vst.msk [vmem:[#allocation3 + $0xe0] sm:$0xff] %vm794, %v755
          %824 = vst.msk [vmem:[#allocation3 + $0xe8] sm:$0xff] %vm794, %v757
          %825 = vst.msk [vmem:[#allocation3 + $0xf0] sm:$0xff] %vm794, %v759
          %826 = vst.msk [vmem:[#allocation3 + $0xf8] sm:$0xff] %vm794, %v761
          %s827 = sadd.s32 %s373, 1
          %s828 = smul.u32 %s827, 32
          %s829 = scalar_lea.vmem [#allocation2], %s828
          %v830 = vld [vmem:[%s829 + $0x7] sm:$0xff]
          %v831 = vld [vmem:[%s829 + $0xf] sm:$0xff]
          %v832 = vld [vmem:[%s829 + $0x27] sm:$0xff]
          %v833 = vld [vmem:[%s829 + $0x2f] sm:$0xff]
          %v834 = vld [vmem:[%s829 + $0x47] sm:$0xff]
          %v835 = vld [vmem:[%s829 + $0x4f] sm:$0xff]
          %v836 = vld [vmem:[%s829 + $0x67] sm:$0xff]
          %v837 = vld [vmem:[%s829 + $0x6f] sm:$0xff]
          %v838 = vld [vmem:[%s829 + $0x87] sm:$0xff]
          %v839 = vld [vmem:[%s829 + $0x8f] sm:$0xff]
          %v840 = vld [vmem:[%s829 + $0xa7] sm:$0xff]
          %v841 = vld [vmem:[%s829 + $0xaf] sm:$0xff]
          %v842 = vld [vmem:[%s829 + $0xc7] sm:$0xff]
          %v843 = vld [vmem:[%s829 + $0xcf] sm:$0xff]
          %v844 = vld [vmem:[%s829 + $0xe7] sm:$0xff]
          %v845 = vld [vmem:[%s829 + $0xef] sm:$0xff]
          %v846 = vld [vmem:[%s829 + $0x107] sm:$0xff]
          %v847 = vld [vmem:[%s829 + $0x10f] sm:$0xff]
          %v848 = vld [vmem:[%s829 + $0x127] sm:$0xff]
          %v849 = vld [vmem:[%s829 + $0x12f] sm:$0xff]
          %v850 = vld [vmem:[%s829 + $0x147] sm:$0xff]
          %v851 = vld [vmem:[%s829 + $0x14f] sm:$0xff]
          %v852 = vld [vmem:[%s829 + $0x167] sm:$0xff]
          %v853 = vld [vmem:[%s829 + $0x16f] sm:$0xff]
          %v854 = vld [vmem:[%s829 + $0x187] sm:$0xff]
          %v855 = vld [vmem:[%s829 + $0x18f] sm:$0xff]
          %v856 = vld [vmem:[%s829 + $0x1a7] sm:$0xff]
          %v857 = vld [vmem:[%s829 + $0x1af] sm:$0xff]
          %v858 = vld [vmem:[%s829 + $0x1c7] sm:$0xff]
          %v859 = vld [vmem:[%s829 + $0x1cf] sm:$0xff]
          %v860 = vld [vmem:[%s829 + $0x1e7] sm:$0xff]
          %v861 = vld [vmem:[%s829 + $0x1ef] sm:$0xff]
          %894 = vrot.lane.b32.xlu0 %v830, 12
          %v895 = vpop.permute.xlu0 %894
          %896 = vrot.lane.b32.xlu0 %v831, 12
          %v897 = vpop.permute.xlu0 %896
          %898 = vrot.lane.b32.xlu0 %v832, 12
          %v899 = vpop.permute.xlu0 %898
          %900 = vrot.lane.b32.xlu0 %v833, 12
          %v901 = vpop.permute.xlu0 %900
          %902 = vrot.lane.b32.xlu0 %v834, 12
          %v903 = vpop.permute.xlu0 %902
          %904 = vrot.lane.b32.xlu0 %v835, 12
          %v905 = vpop.permute.xlu0 %904
          %906 = vrot.lane.b32.xlu0 %v836, 12
          %v907 = vpop.permute.xlu0 %906
          %908 = vrot.lane.b32.xlu0 %v837, 12
          %v909 = vpop.permute.xlu0 %908
          %910 = vrot.lane.b32.xlu0 %v838, 12
          %v911 = vpop.permute.xlu0 %910
          %912 = vrot.lane.b32.xlu0 %v839, 12
          %v913 = vpop.permute.xlu0 %912
          %914 = vrot.lane.b32.xlu0 %v840, 12
          %v915 = vpop.permute.xlu0 %914
          %916 = vrot.lane.b32.xlu0 %v841, 12
          %v917 = vpop.permute.xlu0 %916
          %918 = vrot.lane.b32.xlu0 %v842, 12
          %v919 = vpop.permute.xlu0 %918
          %920 = vrot.lane.b32.xlu0 %v843, 12
          %v921 = vpop.permute.xlu0 %920
          %922 = vrot.lane.b32.xlu0 %v844, 12
          %v923 = vpop.permute.xlu0 %922
          %924 = vrot.lane.b32.xlu0 %v845, 12
          %v925 = vpop.permute.xlu0 %924
          %926 = vrot.lane.b32.xlu0 %v846, 12
          %v927 = vpop.permute.xlu0 %926
          %928 = vrot.lane.b32.xlu0 %v847, 12
          %v929 = vpop.permute.xlu0 %928
          %930 = vrot.lane.b32.xlu0 %v848, 12
          %v931 = vpop.permute.xlu0 %930
          %932 = vrot.lane.b32.xlu0 %v849, 12
          %v933 = vpop.permute.xlu0 %932
          %934 = vrot.lane.b32.xlu0 %v850, 12
          %v935 = vpop.permute.xlu0 %934
          %936 = vrot.lane.b32.xlu0 %v851, 12
          %v937 = vpop.permute.xlu0 %936
          %938 = vrot.lane.b32.xlu0 %v852, 12
          %v939 = vpop.permute.xlu0 %938
          %940 = vrot.lane.b32.xlu0 %v853, 12
          %v941 = vpop.permute.xlu0 %940
          %942 = vrot.lane.b32.xlu0 %v854, 12
          %v943 = vpop.permute.xlu0 %942
          %944 = vrot.lane.b32.xlu0 %v855, 12
          %v945 = vpop.permute.xlu0 %944
          %946 = vrot.lane.b32.xlu0 %v856, 12
          %v947 = vpop.permute.xlu0 %946
          %948 = vrot.lane.b32.xlu0 %v857, 12
          %v949 = vpop.permute.xlu0 %948
          %950 = vrot.lane.b32.xlu0 %v858, 12
          %v951 = vpop.permute.xlu0 %950
          %952 = vrot.lane.b32.xlu0 %v859, 12
          %v953 = vpop.permute.xlu0 %952
          %954 = vrot.lane.b32.xlu0 %v860, 12
          %v955 = vpop.permute.xlu0 %954
          %956 = vrot.lane.b32.xlu0 %v861, 12
          %v957 = vpop.permute.xlu0 %956
          %vm990 = vcmask 130144
          %991 = vst.msk [vmem:[#allocation3] sm:$0xff] %vm990, %v895
          %992 = vst.msk [vmem:[#allocation3 + $0x8] sm:$0xff] %vm990, %v897
          %993 = vst.msk [vmem:[#allocation3 + $0x10] sm:$0xff] %vm990, %v899
          %994 = vst.msk [vmem:[#allocation3 + $0x18] sm:$0xff] %vm990, %v901
          %995 = vst.msk [vmem:[#allocation3 + $0x20] sm:$0xff] %vm990, %v903
          %996 = vst.msk [vmem:[#allocation3 + $0x28] sm:$0xff] %vm990, %v905
          %997 = vst.msk [vmem:[#allocation3 + $0x30] sm:$0xff] %vm990, %v907
          %998 = vst.msk [vmem:[#allocation3 + $0x38] sm:$0xff] %vm990, %v909
          %999 = vst.msk [vmem:[#allocation3 + $0x40] sm:$0xff] %vm990, %v911
          %1000 = vst.msk [vmem:[#allocation3 + $0x48] sm:$0xff] %vm990, %v913
          %1001 = vst.msk [vmem:[#allocation3 + $0x50] sm:$0xff] %vm990, %v915
          %1002 = vst.msk [vmem:[#allocation3 + $0x58] sm:$0xff] %vm990, %v917
          %1003 = vst.msk [vmem:[#allocation3 + $0x60] sm:$0xff] %vm990, %v919
          %1004 = vst.msk [vmem:[#allocation3 + $0x68] sm:$0xff] %vm990, %v921
          %1005 = vst.msk [vmem:[#allocation3 + $0x70] sm:$0xff] %vm990, %v923
          %1006 = vst.msk [vmem:[#allocation3 + $0x78] sm:$0xff] %vm990, %v925
          %1007 = vst.msk [vmem:[#allocation3 + $0x80] sm:$0xff] %vm990, %v927
          %1008 = vst.msk [vmem:[#allocation3 + $0x88] sm:$0xff] %vm990, %v929
          %1009 = vst.msk [vmem:[#allocation3 + $0x90] sm:$0xff] %vm990, %v931
          %1010 = vst.msk [vmem:[#allocation3 + $0x98] sm:$0xff] %vm990, %v933
          %1011 = vst.msk [vmem:[#allocation3 + $0xa0] sm:$0xff] %vm990, %v935
          %1012 = vst.msk [vmem:[#allocation3 + $0xa8] sm:$0xff] %vm990, %v937
          %1013 = vst.msk [vmem:[#allocation3 + $0xb0] sm:$0xff] %vm990, %v939
          %1014 = vst.msk [vmem:[#allocation3 + $0xb8] sm:$0xff] %vm990, %v941
          %1015 = vst.msk [vmem:[#allocation3 + $0xc0] sm:$0xff] %vm990, %v943
          %1016 = vst.msk [vmem:[#allocation3 + $0xc8] sm:$0xff] %vm990, %v945
          %1017 = vst.msk [vmem:[#allocation3 + $0xd0] sm:$0xff] %vm990, %v947
          %1018 = vst.msk [vmem:[#allocation3 + $0xd8] sm:$0xff] %vm990, %v949
          %1019 = vst.msk [vmem:[#allocation3 + $0xe0] sm:$0xff] %vm990, %v951
          %1020 = vst.msk [vmem:[#allocation3 + $0xe8] sm:$0xff] %vm990, %v953
          %1021 = vst.msk [vmem:[#allocation3 + $0xf0] sm:$0xff] %vm990, %v955
          %1022 = vst.msk [vmem:[#allocation3 + $0xf8] sm:$0xff] %vm990, %v957
          %v1023 = vld [vmem:[%s829 + $0x8] sm:$0xff]
          %v1024 = vld [vmem:[%s829 + $0x10] sm:$0xff]
          %v1025 = vld [vmem:[%s829 + $0x28] sm:$0xff]
          %v1026 = vld [vmem:[%s829 + $0x30] sm:$0xff]
          %v1027 = vld [vmem:[%s829 + $0x48] sm:$0xff]
          %v1028 = vld [vmem:[%s829 + $0x50] sm:$0xff]
          %v1029 = vld [vmem:[%s829 + $0x68] sm:$0xff]
          %v1030 = vld [vmem:[%s829 + $0x70] sm:$0xff]
          %v1031 = vld [vmem:[%s829 + $0x88] sm:$0xff]
          %v1032 = vld [vmem:[%s829 + $0x90] sm:$0xff]
          %v1033 = vld [vmem:[%s829 + $0xa8] sm:$0xff]
          %v1034 = vld [vmem:[%s829 + $0xb0] sm:$0xff]
          %v1035 = vld [vmem:[%s829 + $0xc8] sm:$0xff]
          %v1036 = vld [vmem:[%s829 + $0xd0] sm:$0xff]
          %v1037 = vld [vmem:[%s829 + $0xe8] sm:$0xff]
          %v1038 = vld [vmem:[%s829 + $0xf0] sm:$0xff]
          %v1039 = vld [vmem:[%s829 + $0x108] sm:$0xff]
          %v1040 = vld [vmem:[%s829 + $0x110] sm:$0xff]
          %v1041 = vld [vmem:[%s829 + $0x128] sm:$0xff]
          %v1042 = vld [vmem:[%s829 + $0x130] sm:$0xff]
          %v1043 = vld [vmem:[%s829 + $0x148] sm:$0xff]
          %v1044 = vld [vmem:[%s829 + $0x150] sm:$0xff]
          %v1045 = vld [vmem:[%s829 + $0x168] sm:$0xff]
          %v1046 = vld [vmem:[%s829 + $0x170] sm:$0xff]
          %v1047 = vld [vmem:[%s829 + $0x188] sm:$0xff]
          %v1048 = vld [vmem:[%s829 + $0x190] sm:$0xff]
          %v1049 = vld [vmem:[%s829 + $0x1a8] sm:$0xff]
          %v1050 = vld [vmem:[%s829 + $0x1b0] sm:$0xff]
          %v1051 = vld [vmem:[%s829 + $0x1c8] sm:$0xff]
          %v1052 = vld [vmem:[%s829 + $0x1d0] sm:$0xff]
          %v1053 = vld [vmem:[%s829 + $0x1e8] sm:$0xff]
          %v1054 = vld [vmem:[%s829 + $0x1f0] sm:$0xff]
          %1087 = vrot.lane.b32.xlu0 %v1023, 16
          %v1088 = vpop.permute.xlu0 %1087
          %1089 = vrot.lane.b32.xlu0 %v1024, 16
          %v1090 = vpop.permute.xlu0 %1089
          %1091 = vrot.lane.b32.xlu0 %v1025, 16
          %v1092 = vpop.permute.xlu0 %1091
          %1093 = vrot.lane.b32.xlu0 %v1026, 16
          %v1094 = vpop.permute.xlu0 %1093
          %1095 = vrot.lane.b32.xlu0 %v1027, 16
          %v1096 = vpop.permute.xlu0 %1095
          %1097 = vrot.lane.b32.xlu0 %v1028, 16
          %v1098 = vpop.permute.xlu0 %1097
          %1099 = vrot.lane.b32.xlu0 %v1029, 16
          %v1100 = vpop.permute.xlu0 %1099
          %1101 = vrot.lane.b32.xlu0 %v1030, 16
          %v1102 = vpop.permute.xlu0 %1101
          %1103 = vrot.lane.b32.xlu0 %v1031, 16
          %v1104 = vpop.permute.xlu0 %1103
          %1105 = vrot.lane.b32.xlu0 %v1032, 16
          %v1106 = vpop.permute.xlu0 %1105
          %1107 = vrot.lane.b32.xlu0 %v1033, 16
          %v1108 = vpop.permute.xlu0 %1107
          %1109 = vrot.lane.b32.xlu0 %v1034, 16
          %v1110 = vpop.permute.xlu0 %1109
          %1111 = vrot.lane.b32.xlu0 %v1035, 16
          %v1112 = vpop.permute.xlu0 %1111
          %1113 = vrot.lane.b32.xlu0 %v1036, 16
          %v1114 = vpop.permute.xlu0 %1113
          %1115 = vrot.lane.b32.xlu0 %v1037, 16
          %v1116 = vpop.permute.xlu0 %1115
          %1117 = vrot.lane.b32.xlu0 %v1038, 16
          %v1118 = vpop.permute.xlu0 %1117
          %1119 = vrot.lane.b32.xlu0 %v1039, 16
          %v1120 = vpop.permute.xlu0 %1119
          %1121 = vrot.lane.b32.xlu0 %v1040, 16
          %v1122 = vpop.permute.xlu0 %1121
          %1123 = vrot.lane.b32.xlu0 %v1041, 16
          %v1124 = vpop.permute.xlu0 %1123
          %1125 = vrot.lane.b32.xlu0 %v1042, 16
          %v1126 = vpop.permute.xlu0 %1125
          %1127 = vrot.lane.b32.xlu0 %v1043, 16
          %v1128 = vpop.permute.xlu0 %1127
          %1129 = vrot.lane.b32.xlu0 %v1044, 16
          %v1130 = vpop.permute.xlu0 %1129
          %1131 = vrot.lane.b32.xlu0 %v1045, 16
          %v1132 = vpop.permute.xlu0 %1131
          %1133 = vrot.lane.b32.xlu0 %v1046, 16
          %v1134 = vpop.permute.xlu0 %1133
          %1135 = vrot.lane.b32.xlu0 %v1047, 16
          %v1136 = vpop.permute.xlu0 %1135
          %1137 = vrot.lane.b32.xlu0 %v1048, 16
          %v1138 = vpop.permute.xlu0 %1137
          %1139 = vrot.lane.b32.xlu0 %v1049, 16
          %v1140 = vpop.permute.xlu0 %1139
          %1141 = vrot.lane.b32.xlu0 %v1050, 16
          %v1142 = vpop.permute.xlu0 %1141
          %1143 = vrot.lane.b32.xlu0 %v1051, 16
          %v1144 = vpop.permute.xlu0 %1143
          %1145 = vrot.lane.b32.xlu0 %v1052, 16
          %v1146 = vpop.permute.xlu0 %1145
          %1147 = vrot.lane.b32.xlu0 %v1053, 16
          %v1148 = vpop.permute.xlu0 %1147
          %1149 = vrot.lane.b32.xlu0 %v1054, 16
          %v1150 = vpop.permute.xlu0 %1149
          %vm1183 = vcmask 162944
          %1184 = vst.msk [vmem:[#allocation3] sm:$0xff] %vm1183, %v1088
          %1185 = vst.msk [vmem:[#allocation3 + $0x8] sm:$0xff] %vm1183, %v1090
          %1186 = vst.msk [vmem:[#allocation3 + $0x10] sm:$0xff] %vm1183, %v1092
          %1187 = vst.msk [vmem:[#allocation3 + $0x18] sm:$0xff] %vm1183, %v1094
          %1188 = vst.msk [vmem:[#allocation3 + $0x20] sm:$0xff] %vm1183, %v1096
          %1189 = vst.msk [vmem:[#allocation3 + $0x28] sm:$0xff] %vm1183, %v1098
          %1190 = vst.msk [vmem:[#allocation3 + $0x30] sm:$0xff] %vm1183, %v1100
          %1191 = vst.msk [vmem:[#allocation3 + $0x38] sm:$0xff] %vm1183, %v1102
          %1192 = vst.msk [vmem:[#allocation3 + $0x40] sm:$0xff] %vm1183, %v1104
          %1193 = vst.msk [vmem:[#allocation3 + $0x48] sm:$0xff] %vm1183, %v1106
          %1194 = vst.msk [vmem:[#allocation3 + $0x50] sm:$0xff] %vm1183, %v1108
          %1195 = vst.msk [vmem:[#allocation3 + $0x58] sm:$0xff] %vm1183, %v1110
          %1196 = vst.msk [vmem:[#allocation3 + $0x60] sm:$0xff] %vm1183, %v1112
          %1197 = vst.msk [vmem:[#allocation3 + $0x68] sm:$0xff] %vm1183, %v1114
          %1198 = vst.msk [vmem:[#allocation3 + $0x70] sm:$0xff] %vm1183, %v1116
          %1199 = vst.msk [vmem:[#allocation3 + $0x78] sm:$0xff] %vm1183, %v1118
          %1200 = vst.msk [vmem:[#allocation3 + $0x80] sm:$0xff] %vm1183, %v1120
          %1201 = vst.msk [vmem:[#allocation3 + $0x88] sm:$0xff] %vm1183, %v1122
          %1202 = vst.msk [vmem:[#allocation3 + $0x90] sm:$0xff] %vm1183, %v1124
          %1203 = vst.msk [vmem:[#allocation3 + $0x98] sm:$0xff] %vm1183, %v1126
          %1204 = vst.msk [vmem:[#allocation3 + $0xa0] sm:$0xff] %vm1183, %v1128
          %1205 = vst.msk [vmem:[#allocation3 + $0xa8] sm:$0xff] %vm1183, %v1130
          %1206 = vst.msk [vmem:[#allocation3 + $0xb0] sm:$0xff] %vm1183, %v1132
          %1207 = vst.msk [vmem:[#allocation3 + $0xb8] sm:$0xff] %vm1183, %v1134
          %1208 = vst.msk [vmem:[#allocation3 + $0xc0] sm:$0xff] %vm1183, %v1136
          %1209 = vst.msk [vmem:[#allocation3 + $0xc8] sm:$0xff] %vm1183, %v1138
          %1210 = vst.msk [vmem:[#allocation3 + $0xd0] sm:$0xff] %vm1183, %v1140
          %1211 = vst.msk [vmem:[#allocation3 + $0xd8] sm:$0xff] %vm1183, %v1142
          %1212 = vst.msk [vmem:[#allocation3 + $0xe0] sm:$0xff] %vm1183, %v1144
          %1213 = vst.msk [vmem:[#allocation3 + $0xe8] sm:$0xff] %vm1183, %v1146
          %1214 = vst.msk [vmem:[#allocation3 + $0xf0] sm:$0xff] %vm1183, %v1148
          %1215 = vst.msk [vmem:[#allocation3 + $0xf8] sm:$0xff] %vm1183, %v1150
          %v1216 = vld [vmem:[%s829 + $0x9] sm:$0xff]
          %v1217 = vld [vmem:[%s829 + $0x11] sm:$0xff]
          %v1218 = vld [vmem:[%s829 + $0x29] sm:$0xff]
          %v1219 = vld [vmem:[%s829 + $0x31] sm:$0xff]
          %v1220 = vld [vmem:[%s829 + $0x49] sm:$0xff]
          %v1221 = vld [vmem:[%s829 + $0x51] sm:$0xff]
          %v1222 = vld [vmem:[%s829 + $0x69] sm:$0xff]
          %v1223 = vld [vmem:[%s829 + $0x71] sm:$0xff]
          %v1224 = vld [vmem:[%s829 + $0x89] sm:$0xff]
          %v1225 = vld [vmem:[%s829 + $0x91] sm:$0xff]
          %v1226 = vld [vmem:[%s829 + $0xa9] sm:$0xff]
          %v1227 = vld [vmem:[%s829 + $0xb1] sm:$0xff]
          %v1228 = vld [vmem:[%s829 + $0xc9] sm:$0xff]
          %v1229 = vld [vmem:[%s829 + $0xd1] sm:$0xff]
          %v1230 = vld [vmem:[%s829 + $0xe9] sm:$0xff]
          %v1231 = vld [vmem:[%s829 + $0xf1] sm:$0xff]
          %v1232 = vld [vmem:[%s829 + $0x109] sm:$0xff]
          %v1233 = vld [vmem:[%s829 + $0x111] sm:$0xff]
          %v1234 = vld [vmem:[%s829 + $0x129] sm:$0xff]
          %v1235 = vld [vmem:[%s829 + $0x131] sm:$0xff]
          %v1236 = vld [vmem:[%s829 + $0x149] sm:$0xff]
          %v1237 = vld [vmem:[%s829 + $0x151] sm:$0xff]
          %v1238 = vld [vmem:[%s829 + $0x169] sm:$0xff]
          %v1239 = vld [vmem:[%s829 + $0x171] sm:$0xff]
          %v1240 = vld [vmem:[%s829 + $0x189] sm:$0xff]
          %v1241 = vld [vmem:[%s829 + $0x191] sm:$0xff]
          %v1242 = vld [vmem:[%s829 + $0x1a9] sm:$0xff]
          %v1243 = vld [vmem:[%s829 + $0x1b1] sm:$0xff]
          %v1244 = vld [vmem:[%s829 + $0x1c9] sm:$0xff]
          %v1245 = vld [vmem:[%s829 + $0x1d1] sm:$0xff]
          %v1246 = vld [vmem:[%s829 + $0x1e9] sm:$0xff]
          %v1247 = vld [vmem:[%s829 + $0x1f1] sm:$0xff]
          %1280 = vrot.lane.b32.xlu0 %v1216, 20
          %v1281 = vpop.permute.xlu0 %1280
          %1282 = vrot.lane.b32.xlu0 %v1217, 20
          %v1283 = vpop.permute.xlu0 %1282
          %1284 = vrot.lane.b32.xlu0 %v1218, 20
          %v1285 = vpop.permute.xlu0 %1284
          %1286 = vrot.lane.b32.xlu0 %v1219, 20
          %v1287 = vpop.permute.xlu0 %1286
          %1288 = vrot.lane.b32.xlu0 %v1220, 20
          %v1289 = vpop.permute.xlu0 %1288
          %1290 = vrot.lane.b32.xlu0 %v1221, 20
          %v1291 = vpop.permute.xlu0 %1290
          %1292 = vrot.lane.b32.xlu0 %v1222, 20
          %v1293 = vpop.permute.xlu0 %1292
          %1294 = vrot.lane.b32.xlu0 %v1223, 20
          %v1295 = vpop.permute.xlu0 %1294
          %1296 = vrot.lane.b32.xlu0 %v1224, 20
          %v1297 = vpop.permute.xlu0 %1296
          %1298 = vrot.lane.b32.xlu0 %v1225, 20
          %v1299 = vpop.permute.xlu0 %1298
          %1300 = vrot.lane.b32.xlu0 %v1226, 20
          %v1301 = vpop.permute.xlu0 %1300
          %1302 = vrot.lane.b32.xlu0 %v1227, 20
          %v1303 = vpop.permute.xlu0 %1302
          %1304 = vrot.lane.b32.xlu0 %v1228, 20
          %v1305 = vpop.permute.xlu0 %1304
          %1306 = vrot.lane.b32.xlu0 %v1229, 20
          %v1307 = vpop.permute.xlu0 %1306
          %1308 = vrot.lane.b32.xlu0 %v1230, 20
          %v1309 = vpop.permute.xlu0 %1308
          %1310 = vrot.lane.b32.xlu0 %v1231, 20
          %v1311 = vpop.permute.xlu0 %1310
          %1312 = vrot.lane.b32.xlu0 %v1232, 20
          %v1313 = vpop.permute.xlu0 %1312
          %1314 = vrot.lane.b32.xlu0 %v1233, 20
          %v1315 = vpop.permute.xlu0 %1314
          %1316 = vrot.lane.b32.xlu0 %v1234, 20
          %v1317 = vpop.permute.xlu0 %1316
          %1318 = vrot.lane.b32.xlu0 %v1235, 20
          %v1319 = vpop.permute.xlu0 %1318
          %1320 = vrot.lane.b32.xlu0 %v1236, 20
          %v1321 = vpop.permute.xlu0 %1320
          %1322 = vrot.lane.b32.xlu0 %v1237, 20
          %v1323 = vpop.permute.xlu0 %1322
          %1324 = vrot.lane.b32.xlu0 %v1238, 20
          %v1325 = vpop.permute.xlu0 %1324
          %1326 = vrot.lane.b32.xlu0 %v1239, 20
          %v1327 = vpop.permute.xlu0 %1326
          %1328 = vrot.lane.b32.xlu0 %v1240, 20
          %v1329 = vpop.permute.xlu0 %1328
          %1330 = vrot.lane.b32.xlu0 %v1241, 20
          %v1331 = vpop.permute.xlu0 %1330
          %1332 = vrot.lane.b32.xlu0 %v1242, 20
          %v1333 = vpop.permute.xlu0 %1332
          %1334 = vrot.lane.b32.xlu0 %v1243, 20
          %v1335 = vpop.permute.xlu0 %1334
          %1336 = vrot.lane.b32.xlu0 %v1244, 20
          %v1337 = vpop.permute.xlu0 %1336
          %1338 = vrot.lane.b32.xlu0 %v1245, 20
          %v1339 = vpop.permute.xlu0 %1338
          %1340 = vrot.lane.b32.xlu0 %v1246, 20
          %v1341 = vpop.permute.xlu0 %1340
          %1342 = vrot.lane.b32.xlu0 %v1247, 20
          %v1343 = vpop.permute.xlu0 %1342
          %vm1376 = vcmask 195744
          %1377 = vst.msk [vmem:[#allocation3] sm:$0xff] %vm1376, %v1281
          %1378 = vst.msk [vmem:[#allocation3 + $0x8] sm:$0xff] %vm1376, %v1283
          %1379 = vst.msk [vmem:[#allocation3 + $0x10] sm:$0xff] %vm1376, %v1285
          %1380 = vst.msk [vmem:[#allocation3 + $0x18] sm:$0xff] %vm1376, %v1287
          %1381 = vst.msk [vmem:[#allocation3 + $0x20] sm:$0xff] %vm1376, %v1289
          %1382 = vst.msk [vmem:[#allocation3 + $0x28] sm:$0xff] %vm1376, %v1291
          %1383 = vst.msk [vmem:[#allocation3 + $0x30] sm:$0xff] %vm1376, %v1293
          %1384 = vst.msk [vmem:[#allocation3 + $0x38] sm:$0xff] %vm1376, %v1295
          %1385 = vst.msk [vmem:[#allocation3 + $0x40] sm:$0xff] %vm1376, %v1297
          %1386 = vst.msk [vmem:[#allocation3 + $0x48] sm:$0xff] %vm1376, %v1299
          %1387 = vst.msk [vmem:[#allocation3 + $0x50] sm:$0xff] %vm1376, %v1301
          %1388 = vst.msk [vmem:[#allocation3 + $0x58] sm:$0xff] %vm1376, %v1303
          %1389 = vst.msk [vmem:[#allocation3 + $0x60] sm:$0xff] %vm1376, %v1305
          %1390 = vst.msk [vmem:[#allocation3 + $0x68] sm:$0xff] %vm1376, %v1307
          %1391 = vst.msk [vmem:[#allocation3 + $0x70] sm:$0xff] %vm1376, %v1309
          %1392 = vst.msk [vmem:[#allocation3 + $0x78] sm:$0xff] %vm1376, %v1311
          %1393 = vst.msk [vmem:[#allocation3 + $0x80] sm:$0xff] %vm1376, %v1313
          %1394 = vst.msk [vmem:[#allocation3 + $0x88] sm:$0xff] %vm1376, %v1315
          %1395 = vst.msk [vmem:[#allocation3 + $0x90] sm:$0xff] %vm1376, %v1317
          %1396 = vst.msk [vmem:[#allocation3 + $0x98] sm:$0xff] %vm1376, %v1319
          %1397 = vst.msk [vmem:[#allocation3 + $0xa0] sm:$0xff] %vm1376, %v1321
          %1398 = vst.msk [vmem:[#allocation3 + $0xa8] sm:$0xff] %vm1376, %v1323
          %1399 = vst.msk [vmem:[#allocation3 + $0xb0] sm:$0xff] %vm1376, %v1325
          %1400 = vst.msk [vmem:[#allocation3 + $0xb8] sm:$0xff] %vm1376, %v1327
          %1401 = vst.msk [vmem:[#allocation3 + $0xc0] sm:$0xff] %vm1376, %v1329
          %1402 = vst.msk [vmem:[#allocation3 + $0xc8] sm:$0xff] %vm1376, %v1331
          %1403 = vst.msk [vmem:[#allocation3 + $0xd0] sm:$0xff] %vm1376, %v1333
          %1404 = vst.msk [vmem:[#allocation3 + $0xd8] sm:$0xff] %vm1376, %v1335
          %1405 = vst.msk [vmem:[#allocation3 + $0xe0] sm:$0xff] %vm1376, %v1337
          %1406 = vst.msk [vmem:[#allocation3 + $0xe8] sm:$0xff] %vm1376, %v1339
          %1407 = vst.msk [vmem:[#allocation3 + $0xf0] sm:$0xff] %vm1376, %v1341
          %1408 = vst.msk [vmem:[#allocation3 + $0xf8] sm:$0xff] %vm1376, %v1343
          %s1409 = sadd.s32 %s373, 2
          %s1410 = smul.u32 %s1409, 32
          %s1411 = scalar_lea.vmem [#allocation2], %s1410
          %v1412 = vld [vmem:[%s1411 + $0x7] sm:$0xff]
          %v1413 = vld [vmem:[%s1411 + $0xf] sm:$0xff]
          %v1414 = vld [vmem:[%s1411 + $0x27] sm:$0xff]
          %v1415 = vld [vmem:[%s1411 + $0x2f] sm:$0xff]
          %v1416 = vld [vmem:[%s1411 + $0x47] sm:$0xff]
          %v1417 = vld [vmem:[%s1411 + $0x4f] sm:$0xff]
          %v1418 = vld [vmem:[%s1411 + $0x67] sm:$0xff]
          %v1419 = vld [vmem:[%s1411 + $0x6f] sm:$0xff]
          %v1420 = vld [vmem:[%s1411 + $0x87] sm:$0xff]
          %v1421 = vld [vmem:[%s1411 + $0x8f] sm:$0xff]
          %v1422 = vld [vmem:[%s1411 + $0xa7] sm:$0xff]
          %v1423 = vld [vmem:[%s1411 + $0xaf] sm:$0xff]
          %v1424 = vld [vmem:[%s1411 + $0xc7] sm:$0xff]
          %v1425 = vld [vmem:[%s1411 + $0xcf] sm:$0xff]
          %v1426 = vld [vmem:[%s1411 + $0xe7] sm:$0xff]
          %v1427 = vld [vmem:[%s1411 + $0xef] sm:$0xff]
          %v1428 = vld [vmem:[%s1411 + $0x107] sm:$0xff]
          %v1429 = vld [vmem:[%s1411 + $0x10f] sm:$0xff]
          %v1430 = vld [vmem:[%s1411 + $0x127] sm:$0xff]
          %v1431 = vld [vmem:[%s1411 + $0x12f] sm:$0xff]
          %v1432 = vld [vmem:[%s1411 + $0x147] sm:$0xff]
          %v1433 = vld [vmem:[%s1411 + $0x14f] sm:$0xff]
          %v1434 = vld [vmem:[%s1411 + $0x167] sm:$0xff]
          %v1435 = vld [vmem:[%s1411 + $0x16f] sm:$0xff]
          %v1436 = vld [vmem:[%s1411 + $0x187] sm:$0xff]
          %v1437 = vld [vmem:[%s1411 + $0x18f] sm:$0xff]
          %v1438 = vld [vmem:[%s1411 + $0x1a7] sm:$0xff]
          %v1439 = vld [vmem:[%s1411 + $0x1af] sm:$0xff]
          %v1440 = vld [vmem:[%s1411 + $0x1c7] sm:$0xff]
          %v1441 = vld [vmem:[%s1411 + $0x1cf] sm:$0xff]
          %v1442 = vld [vmem:[%s1411 + $0x1e7] sm:$0xff]
          %v1443 = vld [vmem:[%s1411 + $0x1ef] sm:$0xff]
          %1476 = vrot.lane.b32.xlu0 %v1412, 24
          %v1477 = vpop.permute.xlu0 %1476
          %1478 = vrot.lane.b32.xlu0 %v1413, 24
          %v1479 = vpop.permute.xlu0 %1478
          %1480 = vrot.lane.b32.xlu0 %v1414, 24
          %v1481 = vpop.permute.xlu0 %1480
          %1482 = vrot.lane.b32.xlu0 %v1415, 24
          %v1483 = vpop.permute.xlu0 %1482
          %1484 = vrot.lane.b32.xlu0 %v1416, 24
          %v1485 = vpop.permute.xlu0 %1484
          %1486 = vrot.lane.b32.xlu0 %v1417, 24
          %v1487 = vpop.permute.xlu0 %1486
          %1488 = vrot.lane.b32.xlu0 %v1418, 24
          %v1489 = vpop.permute.xlu0 %1488
          %1490 = vrot.lane.b32.xlu0 %v1419, 24
          %v1491 = vpop.permute.xlu0 %1490
          %1492 = vrot.lane.b32.xlu0 %v1420, 24
          %v1493 = vpop.permute.xlu0 %1492
          %1494 = vrot.lane.b32.xlu0 %v1421, 24
          %v1495 = vpop.permute.xlu0 %1494
          %1496 = vrot.lane.b32.xlu0 %v1422, 24
          %v1497 = vpop.permute.xlu0 %1496
          %1498 = vrot.lane.b32.xlu0 %v1423, 24
          %v1499 = vpop.permute.xlu0 %1498
          %1500 = vrot.lane.b32.xlu0 %v1424, 24
          %v1501 = vpop.permute.xlu0 %1500
          %1502 = vrot.lane.b32.xlu0 %v1425, 24
          %v1503 = vpop.permute.xlu0 %1502
          %1504 = vrot.lane.b32.xlu0 %v1426, 24
          %v1505 = vpop.permute.xlu0 %1504
          %1506 = vrot.lane.b32.xlu0 %v1427, 24
          %v1507 = vpop.permute.xlu0 %1506
          %1508 = vrot.lane.b32.xlu0 %v1428, 24
          %v1509 = vpop.permute.xlu0 %1508
          %1510 = vrot.lane.b32.xlu0 %v1429, 24
          %v1511 = vpop.permute.xlu0 %1510
          %1512 = vrot.lane.b32.xlu0 %v1430, 24
          %v1513 = vpop.permute.xlu0 %1512
          %1514 = vrot.lane.b32.xlu0 %v1431, 24
          %v1515 = vpop.permute.xlu0 %1514
          %1516 = vrot.lane.b32.xlu0 %v1432, 24
          %v1517 = vpop.permute.xlu0 %1516
          %1518 = vrot.lane.b32.xlu0 %v1433, 24
          %v1519 = vpop.permute.xlu0 %1518
          %1520 = vrot.lane.b32.xlu0 %v1434, 24
          %v1521 = vpop.permute.xlu0 %1520
          %1522 = vrot.lane.b32.xlu0 %v1435, 24
          %v1523 = vpop.permute.xlu0 %1522
          %1524 = vrot.lane.b32.xlu0 %v1436, 24
          %v1525 = vpop.permute.xlu0 %1524
          %1526 = vrot.lane.b32.xlu0 %v1437, 24
          %v1527 = vpop.permute.xlu0 %1526
          %1528 = vrot.lane.b32.xlu0 %v1438, 24
          %v1529 = vpop.permute.xlu0 %1528
          %1530 = vrot.lane.b32.xlu0 %v1439, 24
          %v1531 = vpop.permute.xlu0 %1530
          %1532 = vrot.lane.b32.xlu0 %v1440, 24
          %v1533 = vpop.permute.xlu0 %1532
          %1534 = vrot.lane.b32.xlu0 %v1441, 24
          %v1535 = vpop.permute.xlu0 %1534
          %1536 = vrot.lane.b32.xlu0 %v1442, 24
          %v1537 = vpop.permute.xlu0 %1536
          %1538 = vrot.lane.b32.xlu0 %v1443, 24
          %v1539 = vpop.permute.xlu0 %1538
          %vm1572 = vcmask 228544
          %1573 = vst.msk [vmem:[#allocation3] sm:$0xff] %vm1572, %v1477
          %1574 = vst.msk [vmem:[#allocation3 + $0x8] sm:$0xff] %vm1572, %v1479
          %1575 = vst.msk [vmem:[#allocation3 + $0x10] sm:$0xff] %vm1572, %v1481
          %1576 = vst.msk [vmem:[#allocation3 + $0x18] sm:$0xff] %vm1572, %v1483
          %1577 = vst.msk [vmem:[#allocation3 + $0x20] sm:$0xff] %vm1572, %v1485
          %1578 = vst.msk [vmem:[#allocation3 + $0x28] sm:$0xff] %vm1572, %v1487
          %1579 = vst.msk [vmem:[#allocation3 + $0x30] sm:$0xff] %vm1572, %v1489
          %1580 = vst.msk [vmem:[#allocation3 + $0x38] sm:$0xff] %vm1572, %v1491
          %1581 = vst.msk [vmem:[#allocation3 + $0x40] sm:$0xff] %vm1572, %v1493
          %1582 = vst.msk [vmem:[#allocation3 + $0x48] sm:$0xff] %vm1572, %v1495
          %1583 = vst.msk [vmem:[#allocation3 + $0x50] sm:$0xff] %vm1572, %v1497
          %1584 = vst.msk [vmem:[#allocation3 + $0x58] sm:$0xff] %vm1572, %v1499
          %1585 = vst.msk [vmem:[#allocation3 + $0x60] sm:$0xff] %vm1572, %v1501
          %1586 = vst.msk [vmem:[#allocation3 + $0x68] sm:$0xff] %vm1572, %v1503
          %1587 = vst.msk [vmem:[#allocation3 + $0x70] sm:$0xff] %vm1572, %v1505
          %1588 = vst.msk [vmem:[#allocation3 + $0x78] sm:$0xff] %vm1572, %v1507
          %1589 = vst.msk [vmem:[#allocation3 + $0x80] sm:$0xff] %vm1572, %v1509
          %1590 = vst.msk [vmem:[#allocation3 + $0x88] sm:$0xff] %vm1572, %v1511
          %1591 = vst.msk [vmem:[#allocation3 + $0x90] sm:$0xff] %vm1572, %v1513
          %1592 = vst.msk [vmem:[#allocation3 + $0x98] sm:$0xff] %vm1572, %v1515
          %1593 = vst.msk [vmem:[#allocation3 + $0xa0] sm:$0xff] %vm1572, %v1517
          %1594 = vst.msk [vmem:[#allocation3 + $0xa8] sm:$0xff] %vm1572, %v1519
          %1595 = vst.msk [vmem:[#allocation3 + $0xb0] sm:$0xff] %vm1572, %v1521
          %1596 = vst.msk [vmem:[#allocation3 + $0xb8] sm:$0xff] %vm1572, %v1523
          %1597 = vst.msk [vmem:[#allocation3 + $0xc0] sm:$0xff] %vm1572, %v1525
          %1598 = vst.msk [vmem:[#allocation3 + $0xc8] sm:$0xff] %vm1572, %v1527
          %1599 = vst.msk [vmem:[#allocation3 + $0xd0] sm:$0xff] %vm1572, %v1529
          %1600 = vst.msk [vmem:[#allocation3 + $0xd8] sm:$0xff] %vm1572, %v1531
          %1601 = vst.msk [vmem:[#allocation3 + $0xe0] sm:$0xff] %vm1572, %v1533
          %1602 = vst.msk [vmem:[#allocation3 + $0xe8] sm:$0xff] %vm1572, %v1535
          %1603 = vst.msk [vmem:[#allocation3 + $0xf0] sm:$0xff] %vm1572, %v1537
          %1604 = vst.msk [vmem:[#allocation3 + $0xf8] sm:$0xff] %vm1572, %v1539
          %v1605 = vld [vmem:[%s1411 + $0x8] sm:$0xff]
          %v1606 = vld [vmem:[%s1411 + $0x10] sm:$0xff]
          %v1607 = vld [vmem:[%s1411 + $0x28] sm:$0xff]
          %v1608 = vld [vmem:[%s1411 + $0x30] sm:$0xff]
          %v1609 = vld [vmem:[%s1411 + $0x48] sm:$0xff]
          %v1610 = vld [vmem:[%s1411 + $0x50] sm:$0xff]
          %v1611 = vld [vmem:[%s1411 + $0x68] sm:$0xff]
          %v1612 = vld [vmem:[%s1411 + $0x70] sm:$0xff]
          %v1613 = vld [vmem:[%s1411 + $0x88] sm:$0xff]
          %v1614 = vld [vmem:[%s1411 + $0x90] sm:$0xff]
          %v1615 = vld [vmem:[%s1411 + $0xa8] sm:$0xff]
          %v1616 = vld [vmem:[%s1411 + $0xb0] sm:$0xff]
          %v1617 = vld [vmem:[%s1411 + $0xc8] sm:$0xff]
          %v1618 = vld [vmem:[%s1411 + $0xd0] sm:$0xff]
          %v1619 = vld [vmem:[%s1411 + $0xe8] sm:$0xff]
          %v1620 = vld [vmem:[%s1411 + $0xf0] sm:$0xff]
          %v1621 = vld [vmem:[%s1411 + $0x108] sm:$0xff]
          %v1622 = vld [vmem:[%s1411 + $0x110] sm:$0xff]
          %v1623 = vld [vmem:[%s1411 + $0x128] sm:$0xff]
          %v1624 = vld [vmem:[%s1411 + $0x130] sm:$0xff]
          %v1625 = vld [vmem:[%s1411 + $0x148] sm:$0xff]
          %v1626 = vld [vmem:[%s1411 + $0x150] sm:$0xff]
          %v1627 = vld [vmem:[%s1411 + $0x168] sm:$0xff]
          %v1628 = vld [vmem:[%s1411 + $0x170] sm:$0xff]
          %v1629 = vld [vmem:[%s1411 + $0x188] sm:$0xff]
          %v1630 = vld [vmem:[%s1411 + $0x190] sm:$0xff]
          %v1631 = vld [vmem:[%s1411 + $0x1a8] sm:$0xff]
          %v1632 = vld [vmem:[%s1411 + $0x1b0] sm:$0xff]
          %v1633 = vld [vmem:[%s1411 + $0x1c8] sm:$0xff]
          %v1634 = vld [vmem:[%s1411 + $0x1d0] sm:$0xff]
          %v1635 = vld [vmem:[%s1411 + $0x1e8] sm:$0xff]
          %v1636 = vld [vmem:[%s1411 + $0x1f0] sm:$0xff]
          %1669 = vrot.lane.b32.xlu0 %v1605, 28
          %v1670 = vpop.permute.xlu0 %1669
          %1671 = vrot.lane.b32.xlu0 %v1606, 28
          %v1672 = vpop.permute.xlu0 %1671
          %1673 = vrot.lane.b32.xlu0 %v1607, 28
          %v1674 = vpop.permute.xlu0 %1673
          %1675 = vrot.lane.b32.xlu0 %v1608, 28
          %v1676 = vpop.permute.xlu0 %1675
          %1677 = vrot.lane.b32.xlu0 %v1609, 28
          %v1678 = vpop.permute.xlu0 %1677
          %1679 = vrot.lane.b32.xlu0 %v1610, 28
          %v1680 = vpop.permute.xlu0 %1679
          %1681 = vrot.lane.b32.xlu0 %v1611, 28
          %v1682 = vpop.permute.xlu0 %1681
          %1683 = vrot.lane.b32.xlu0 %v1612, 28
          %v1684 = vpop.permute.xlu0 %1683
          %1685 = vrot.lane.b32.xlu0 %v1613, 28
          %v1686 = vpop.permute.xlu0 %1685
          %1687 = vrot.lane.b32.xlu0 %v1614, 28
          %v1688 = vpop.permute.xlu0 %1687
          %1689 = vrot.lane.b32.xlu0 %v1615, 28
          %v1690 = vpop.permute.xlu0 %1689
          %1691 = vrot.lane.b32.xlu0 %v1616, 28
          %v1692 = vpop.permute.xlu0 %1691
          %1693 = vrot.lane.b32.xlu0 %v1617, 28
          %v1694 = vpop.permute.xlu0 %1693
          %1695 = vrot.lane.b32.xlu0 %v1618, 28
          %v1696 = vpop.permute.xlu0 %1695
          %1697 = vrot.lane.b32.xlu0 %v1619, 28
          %v1698 = vpop.permute.xlu0 %1697
          %1699 = vrot.lane.b32.xlu0 %v1620, 28
          %v1700 = vpop.permute.xlu0 %1699
          %1701 = vrot.lane.b32.xlu0 %v1621, 28
          %v1702 = vpop.permute.xlu0 %1701
          %1703 = vrot.lane.b32.xlu0 %v1622, 28
          %v1704 = vpop.permute.xlu0 %1703
          %1705 = vrot.lane.b32.xlu0 %v1623, 28
          %v1706 = vpop.permute.xlu0 %1705
          %1707 = vrot.lane.b32.xlu0 %v1624, 28
          %v1708 = vpop.permute.xlu0 %1707
          %1709 = vrot.lane.b32.xlu0 %v1625, 28
          %v1710 = vpop.permute.xlu0 %1709
          %1711 = vrot.lane.b32.xlu0 %v1626, 28
          %v1712 = vpop.permute.xlu0 %1711
          %1713 = vrot.lane.b32.xlu0 %v1627, 28
          %v1714 = vpop.permute.xlu0 %1713
          %1715 = vrot.lane.b32.xlu0 %v1628, 28
          %v1716 = vpop.permute.xlu0 %1715
          %1717 = vrot.lane.b32.xlu0 %v1629, 28
          %v1718 = vpop.permute.xlu0 %1717
          %1719 = vrot.lane.b32.xlu0 %v1630, 28
          %v1720 = vpop.permute.xlu0 %1719
          %1721 = vrot.lane.b32.xlu0 %v1631, 28
          %v1722 = vpop.permute.xlu0 %1721
          %1723 = vrot.lane.b32.xlu0 %v1632, 28
          %v1724 = vpop.permute.xlu0 %1723
          %1725 = vrot.lane.b32.xlu0 %v1633, 28
          %v1726 = vpop.permute.xlu0 %1725
          %1727 = vrot.lane.b32.xlu0 %v1634, 28
          %v1728 = vpop.permute.xlu0 %1727
          %1729 = vrot.lane.b32.xlu0 %v1635, 28
          %v1730 = vpop.permute.xlu0 %1729
          %1731 = vrot.lane.b32.xlu0 %v1636, 28
          %v1732 = vpop.permute.xlu0 %1731
          %vm1765 = vcmask 261344
          %1766 = vst.msk [vmem:[#allocation3] sm:$0xff] %vm1765, %v1670
          %1767 = vst.msk [vmem:[#allocation3 + $0x8] sm:$0xff] %vm1765, %v1672
          %1768 = vst.msk [vmem:[#allocation3 + $0x10] sm:$0xff] %vm1765, %v1674
          %1769 = vst.msk [vmem:[#allocation3 + $0x18] sm:$0xff] %vm1765, %v1676
          %1770 = vst.msk [vmem:[#allocation3 + $0x20] sm:$0xff] %vm1765, %v1678
          %1771 = vst.msk [vmem:[#allocation3 + $0x28] sm:$0xff] %vm1765, %v1680
          %1772 = vst.msk [vmem:[#allocation3 + $0x30] sm:$0xff] %vm1765, %v1682
          %1773 = vst.msk [vmem:[#allocation3 + $0x38] sm:$0xff] %vm1765, %v1684
          %1774 = vst.msk [vmem:[#allocation3 + $0x40] sm:$0xff] %vm1765, %v1686
          %1775 = vst.msk [vmem:[#allocation3 + $0x48] sm:$0xff] %vm1765, %v1688
          %1776 = vst.msk [vmem:[#allocation3 + $0x50] sm:$0xff] %vm1765, %v1690
          %1777 = vst.msk [vmem:[#allocation3 + $0x58] sm:$0xff] %vm1765, %v1692
          %1778 = vst.msk [vmem:[#allocation3 + $0x60] sm:$0xff] %vm1765, %v1694
          %1779 = vst.msk [vmem:[#allocation3 + $0x68] sm:$0xff] %vm1765, %v1696
          %1780 = vst.msk [vmem:[#allocation3 + $0x70] sm:$0xff] %vm1765, %v1698
          %1781 = vst.msk [vmem:[#allocation3 + $0x78] sm:$0xff] %vm1765, %v1700
          %1782 = vst.msk [vmem:[#allocation3 + $0x80] sm:$0xff] %vm1765, %v1702
          %1783 = vst.msk [vmem:[#allocation3 + $0x88] sm:$0xff] %vm1765, %v1704
          %1784 = vst.msk [vmem:[#allocation3 + $0x90] sm:$0xff] %vm1765, %v1706
          %1785 = vst.msk [vmem:[#allocation3 + $0x98] sm:$0xff] %vm1765, %v1708
          %1786 = vst.msk [vmem:[#allocation3 + $0xa0] sm:$0xff] %vm1765, %v1710
          %1787 = vst.msk [vmem:[#allocation3 + $0xa8] sm:$0xff] %vm1765, %v1712
          %1788 = vst.msk [vmem:[#allocation3 + $0xb0] sm:$0xff] %vm1765, %v1714
          %1789 = vst.msk [vmem:[#allocation3 + $0xb8] sm:$0xff] %vm1765, %v1716
          %1790 = vst.msk [vmem:[#allocation3 + $0xc0] sm:$0xff] %vm1765, %v1718
          %1791 = vst.msk [vmem:[#allocation3 + $0xc8] sm:$0xff] %vm1765, %v1720
          %1792 = vst.msk [vmem:[#allocation3 + $0xd0] sm:$0xff] %vm1765, %v1722
          %1793 = vst.msk [vmem:[#allocation3 + $0xd8] sm:$0xff] %vm1765, %v1724
          %1794 = vst.msk [vmem:[#allocation3 + $0xe0] sm:$0xff] %vm1765, %v1726
          %1795 = vst.msk [vmem:[#allocation3 + $0xe8] sm:$0xff] %vm1765, %v1728
          %1796 = vst.msk [vmem:[#allocation3 + $0xf0] sm:$0xff] %vm1765, %v1730
          %1797 = vst.msk [vmem:[#allocation3 + $0xf8] sm:$0xff] %vm1765, %v1732
          %v1798 = vld [vmem:[%s1411 + $0x9] sm:$0xff]
          %v1799 = vld [vmem:[%s1411 + $0x11] sm:$0xff]
          %v1800 = vld [vmem:[%s1411 + $0x29] sm:$0xff]
          %v1801 = vld [vmem:[%s1411 + $0x31] sm:$0xff]
          %v1802 = vld [vmem:[%s1411 + $0x49] sm:$0xff]
          %v1803 = vld [vmem:[%s1411 + $0x51] sm:$0xff]
          %v1804 = vld [vmem:[%s1411 + $0x69] sm:$0xff]
          %v1805 = vld [vmem:[%s1411 + $0x71] sm:$0xff]
          %v1806 = vld [vmem:[%s1411 + $0x89] sm:$0xff]
          %v1807 = vld [vmem:[%s1411 + $0x91] sm:$0xff]
          %v1808 = vld [vmem:[%s1411 + $0xa9] sm:$0xff]
          %v1809 = vld [vmem:[%s1411 + $0xb1] sm:$0xff]
          %v1810 = vld [vmem:[%s1411 + $0xc9] sm:$0xff]
          %v1811 = vld [vmem:[%s1411 + $0xd1] sm:$0xff]
          %v1812 = vld [vmem:[%s1411 + $0xe9] sm:$0xff]
          %v1813 = vld [vmem:[%s1411 + $0xf1] sm:$0xff]
          %v1814 = vld [vmem:[%s1411 + $0x109] sm:$0xff]
          %v1815 = vld [vmem:[%s1411 + $0x111] sm:$0xff]
          %v1816 = vld [vmem:[%s1411 + $0x129] sm:$0xff]
          %v1817 = vld [vmem:[%s1411 + $0x131] sm:$0xff]
          %v1818 = vld [vmem:[%s1411 + $0x149] sm:$0xff]
          %v1819 = vld [vmem:[%s1411 + $0x151] sm:$0xff]
          %v1820 = vld [vmem:[%s1411 + $0x169] sm:$0xff]
          %v1821 = vld [vmem:[%s1411 + $0x171] sm:$0xff]
          %v1822 = vld [vmem:[%s1411 + $0x189] sm:$0xff]
          %v1823 = vld [vmem:[%s1411 + $0x191] sm:$0xff]
          %v1824 = vld [vmem:[%s1411 + $0x1a9] sm:$0xff]
          %v1825 = vld [vmem:[%s1411 + $0x1b1] sm:$0xff]
          %v1826 = vld [vmem:[%s1411 + $0x1c9] sm:$0xff]
          %v1827 = vld [vmem:[%s1411 + $0x1d1] sm:$0xff]
          %v1828 = vld [vmem:[%s1411 + $0x1e9] sm:$0xff]
          %v1829 = vld [vmem:[%s1411 + $0x1f1] sm:$0xff]
          %1862 = vrot.lane.b32.xlu0 %v1798, 32
          %v1863 = vpop.permute.xlu0 %1862
          %1864 = vrot.lane.b32.xlu0 %v1799, 32
          %v1865 = vpop.permute.xlu0 %1864
          %1866 = vrot.lane.b32.xlu0 %v1800, 32
          %v1867 = vpop.permute.xlu0 %1866
          %1868 = vrot.lane.b32.xlu0 %v1801, 32
          %v1869 = vpop.permute.xlu0 %1868
          %1870 = vrot.lane.b32.xlu0 %v1802, 32
          %v1871 = vpop.permute.xlu0 %1870
          %1872 = vrot.lane.b32.xlu0 %v1803, 32
          %v1873 = vpop.permute.xlu0 %1872
          %1874 = vrot.lane.b32.xlu0 %v1804, 32
          %v1875 = vpop.permute.xlu0 %1874
          %1876 = vrot.lane.b32.xlu0 %v1805, 32
          %v1877 = vpop.permute.xlu0 %1876
          %1878 = vrot.lane.b32.xlu0 %v1806, 32
          %v1879 = vpop.permute.xlu0 %1878
          %1880 = vrot.lane.b32.xlu0 %v1807, 32
          %v1881 = vpop.permute.xlu0 %1880
          %1882 = vrot.lane.b32.xlu0 %v1808, 32
          %v1883 = vpop.permute.xlu0 %1882
          %1884 = vrot.lane.b32.xlu0 %v1809, 32
          %v1885 = vpop.permute.xlu0 %1884
          %1886 = vrot.lane.b32.xlu0 %v1810, 32
          %v1887 = vpop.permute.xlu0 %1886
          %1888 = vrot.lane.b32.xlu0 %v1811, 32
          %v1889 = vpop.permute.xlu0 %1888
          %1890 = vrot.lane.b32.xlu0 %v1812, 32
          %v1891 = vpop.permute.xlu0 %1890
          %1892 = vrot.lane.b32.xlu0 %v1813, 32
          %v1893 = vpop.permute.xlu0 %1892
          %1894 = vrot.lane.b32.xlu0 %v1814, 32
          %v1895 = vpop.permute.xlu0 %1894
          %1896 = vrot.lane.b32.xlu0 %v1815, 32
          %v1897 = vpop.permute.xlu0 %1896
          %1898 = vrot.lane.b32.xlu0 %v1816, 32
          %v1899 = vpop.permute.xlu0 %1898
          %1900 = vrot.lane.b32.xlu0 %v1817, 32
          %v1901 = vpop.permute.xlu0 %1900
          %1902 = vrot.lane.b32.xlu0 %v1818, 32
          %v1903 = vpop.permute.xlu0 %1902
          %1904 = vrot.lane.b32.xlu0 %v1819, 32
          %v1905 = vpop.permute.xlu0 %1904
          %1906 = vrot.lane.b32.xlu0 %v1820, 32
          %v1907 = vpop.permute.xlu0 %1906
          %1908 = vrot.lane.b32.xlu0 %v1821, 32
          %v1909 = vpop.permute.xlu0 %1908
          %1910 = vrot.lane.b32.xlu0 %v1822, 32
          %v1911 = vpop.permute.xlu0 %1910
          %1912 = vrot.lane.b32.xlu0 %v1823, 32
          %v1913 = vpop.permute.xlu0 %1912
          %1914 = vrot.lane.b32.xlu0 %v1824, 32
          %v1915 = vpop.permute.xlu0 %1914
          %1916 = vrot.lane.b32.xlu0 %v1825, 32
          %v1917 = vpop.permute.xlu0 %1916
          %1918 = vrot.lane.b32.xlu0 %v1826, 32
          %v1919 = vpop.permute.xlu0 %1918
          %1920 = vrot.lane.b32.xlu0 %v1827, 32
          %v1921 = vpop.permute.xlu0 %1920
          %1922 = vrot.lane.b32.xlu0 %v1828, 32
          %v1923 = vpop.permute.xlu0 %1922
          %1924 = vrot.lane.b32.xlu0 %v1829, 32
          %v1925 = vpop.permute.xlu0 %1924
          %vm1958 = vcmask 294144
          %1959 = vst.msk [vmem:[#allocation3] sm:$0xff] %vm1958, %v1863
          %1960 = vst.msk [vmem:[#allocation3 + $0x8] sm:$0xff] %vm1958, %v1865
          %1961 = vst.msk [vmem:[#allocation3 + $0x10] sm:$0xff] %vm1958, %v1867
          %1962 = vst.msk [vmem:[#allocation3 + $0x18] sm:$0xff] %vm1958, %v1869
          %1963 = vst.msk [vmem:[#allocation3 + $0x20] sm:$0xff] %vm1958, %v1871
          %1964 = vst.msk [vmem:[#allocation3 + $0x28] sm:$0xff] %vm1958, %v1873
          %1965 = vst.msk [vmem:[#allocation3 + $0x30] sm:$0xff] %vm1958, %v1875
          %1966 = vst.msk [vmem:[#allocation3 + $0x38] sm:$0xff] %vm1958, %v1877
          %1967 = vst.msk [vmem:[#allocation3 + $0x40] sm:$0xff] %vm1958, %v1879
          %1968 = vst.msk [vmem:[#allocation3 + $0x48] sm:$0xff] %vm1958, %v1881
          %1969 = vst.msk [vmem:[#allocation3 + $0x50] sm:$0xff] %vm1958, %v1883
          %1970 = vst.msk [vmem:[#allocation3 + $0x58] sm:$0xff] %vm1958, %v1885
          %1971 = vst.msk [vmem:[#allocation3 + $0x60] sm:$0xff] %vm1958, %v1887
          %1972 = vst.msk [vmem:[#allocation3 + $0x68] sm:$0xff] %vm1958, %v1889
          %1973 = vst.msk [vmem:[#allocation3 + $0x70] sm:$0xff] %vm1958, %v1891
          %1974 = vst.msk [vmem:[#allocation3 + $0x78] sm:$0xff] %vm1958, %v1893
          %1975 = vst.msk [vmem:[#allocation3 + $0x80] sm:$0xff] %vm1958, %v1895
          %1976 = vst.msk [vmem:[#allocation3 + $0x88] sm:$0xff] %vm1958, %v1897
          %1977 = vst.msk [vmem:[#allocation3 + $0x90] sm:$0xff] %vm1958, %v1899
          %1978 = vst.msk [vmem:[#allocation3 + $0x98] sm:$0xff] %vm1958, %v1901
          %1979 = vst.msk [vmem:[#allocation3 + $0xa0] sm:$0xff] %vm1958, %v1903
          %1980 = vst.msk [vmem:[#allocation3 + $0xa8] sm:$0xff] %vm1958, %v1905
          %1981 = vst.msk [vmem:[#allocation3 + $0xb0] sm:$0xff] %vm1958, %v1907
          %1982 = vst.msk [vmem:[#allocation3 + $0xb8] sm:$0xff] %vm1958, %v1909
          %1983 = vst.msk [vmem:[#allocation3 + $0xc0] sm:$0xff] %vm1958, %v1911
          %1984 = vst.msk [vmem:[#allocation3 + $0xc8] sm:$0xff] %vm1958, %v1913
          %1985 = vst.msk [vmem:[#allocation3 + $0xd0] sm:$0xff] %vm1958, %v1915
          %1986 = vst.msk [vmem:[#allocation3 + $0xd8] sm:$0xff] %vm1958, %v1917
          %1987 = vst.msk [vmem:[#allocation3 + $0xe0] sm:$0xff] %vm1958, %v1919
          %1988 = vst.msk [vmem:[#allocation3 + $0xe8] sm:$0xff] %vm1958, %v1921
          %1989 = vst.msk [vmem:[#allocation3 + $0xf0] sm:$0xff] %vm1958, %v1923
          %1990 = vst.msk [vmem:[#allocation3 + $0xf8] sm:$0xff] %vm1958, %v1925
        $region40: #{tpu_custom_call.1} parent=31 // pred_fallthru
          _
        %v1991 = vld [vmem:[#allocation3] sm:$0xff]
        %v1992 = vld [vmem:[#allocation3 + $0x8] sm:$0xff]
        %v1993 = vld [vmem:[#allocation3 + $0x10] sm:$0xff]
        %v1994 = vld [vmem:[#allocation3 + $0x18] sm:$0xff]
        %v1995 = vld [vmem:[#allocation3 + $0x20] sm:$0xff]
        %v1996 = vld [vmem:[#allocation3 + $0x28] sm:$0xff]
        %v1997 = vld [vmem:[#allocation3 + $0x30] sm:$0xff]
        %v1998 = vld [vmem:[#allocation3 + $0x38] sm:$0xff]
        %v1999 = vld [vmem:[#allocation3 + $0x40] sm:$0xff]
        %v2000 = vld [vmem:[#allocation3 + $0x48] sm:$0xff]
        %v2001 = vld [vmem:[#allocation3 + $0x50] sm:$0xff]
        %v2002 = vld [vmem:[#allocation3 + $0x58] sm:$0xff]
        %v2003 = vld [vmem:[#allocation3 + $0x60] sm:$0xff]
        %v2004 = vld [vmem:[#allocation3 + $0x68] sm:$0xff]
        %v2005 = vld [vmem:[#allocation3 + $0x70] sm:$0xff]
        %v2006 = vld [vmem:[#allocation3 + $0x78] sm:$0xff]
        %v2007 = vld [vmem:[#allocation3 + $0x80] sm:$0xff]
        %v2008 = vld [vmem:[#allocation3 + $0x88] sm:$0xff]
        %v2009 = vld [vmem:[#allocation3 + $0x90] sm:$0xff]
        %v2010 = vld [vmem:[#allocation3 + $0x98] sm:$0xff]
        %v2011 = vld [vmem:[#allocation3 + $0xa0] sm:$0xff]
        %v2012 = vld [vmem:[#allocation3 + $0xa8] sm:$0xff]
        %v2013 = vld [vmem:[#allocation3 + $0xb0] sm:$0xff]
        %v2014 = vld [vmem:[#allocation3 + $0xb8] sm:$0xff]
        %v2015 = vld [vmem:[#allocation3 + $0xc0] sm:$0xff]
        %v2016 = vld [vmem:[#allocation3 + $0xc8] sm:$0xff]
        %v2017 = vld [vmem:[#allocation3 + $0xd0] sm:$0xff]
        %v2018 = vld [vmem:[#allocation3 + $0xd8] sm:$0xff]
        %v2019 = vld [vmem:[#allocation3 + $0xe0] sm:$0xff]
        %v2020 = vld [vmem:[#allocation3 + $0xe8] sm:$0xff]
        %v2021 = vld [vmem:[#allocation3 + $0xf0] sm:$0xff]
        %v2022 = vld [vmem:[#allocation3 + $0xf8] sm:$0xff]
        %v2023 = vld [vmem:[%s219] sm:$0xff]
        %v2024 = vld [vmem:[%s219 + $0x8] sm:$0xff]
        %v2025 = vld [vmem:[%s219 + $0x10] sm:$0xff]
        %v2026 = vld [vmem:[%s219 + $0x18] sm:$0xff]
        %v2027 = vld [vmem:[%s219 + $0x20] sm:$0xff]
        %v2028 = vld [vmem:[%s219 + $0x28] sm:$0xff]
        %v2029 = vld [vmem:[%s219 + $0x30] sm:$0xff]
        %v2030 = vld [vmem:[%s219 + $0x38] sm:$0xff]
        %v2031 = vld [vmem:[%s219 + $0x40] sm:$0xff]
        %v2032 = vld [vmem:[%s219 + $0x48] sm:$0xff]
        %v2033 = vld [vmem:[%s219 + $0x50] sm:$0xff]
        %v2034 = vld [vmem:[%s219 + $0x58] sm:$0xff]
        %v2035 = vld [vmem:[%s219 + $0x60] sm:$0xff]
        %v2036 = vld [vmem:[%s219 + $0x68] sm:$0xff]
        %v2037 = vld [vmem:[%s219 + $0x70] sm:$0xff]
        %v2038 = vld [vmem:[%s219 + $0x78] sm:$0xff]
        %v2039 = vld [vmem:[%s222] sm:$0x1]
        %v2041 = vperm.slane %v2039, 0
        %2043 = vmatpush.msra.mxu0 %v2038
        %2044 = vmatpush.msra.mxu0 %v2037
        %2045 = vmatpush.msra.mxu0 %v2036
        %2046 = vmatpush.msra.mxu0 %v2035
        %2047 = vmatpush.msra.mxu0 %v2034
        %2048 = vmatpush.msra.mxu0 %v2033
        %2049 = vmatpush.msra.mxu0 %v2032
        %2050 = vmatpush.msra.mxu0 %v2031
        %2051 = vmatpush.msra.mxu0 %v2030
        %2052 = vmatpush.msra.mxu0 %v2029
        %2053 = vmatpush.msra.mxu0 %v2028
        %2054 = vmatpush.msra.mxu0 %v2027
        %2055 = vmatpush.msra.mxu0 %v2026
        %2056 = vmatpush.msra.mxu0 %v2025
        %2057 = vmatpush.msra.mxu0 %v2024
        %2058 = vmatpush.msra.mxu0 %v2023
        %2059 = vmatmul.f32.gmra.mxu0 %v1991
        %v2060 = vpop.f32.mrf.mxu0
        %v2061 = vadd.f32 %v2041, %v2060
        %2062 = vmatmul.f32.gmra.mxu0 %v1992
        %v2063 = vpop.f32.mrf.mxu0
        %v2064 = vadd.f32 %v2041, %v2063
        %2065 = vmatmul.f32.gmra.mxu0 %v1993
        %v2066 = vpop.f32.mrf.mxu0
        %v2067 = vadd.f32 %v2041, %v2066
        %2068 = vmatmul.f32.gmra.mxu0 %v1994
        %v2069 = vpop.f32.mrf.mxu0
        %v2070 = vadd.f32 %v2041, %v2069
        %2071 = vmatmul.f32.gmra.mxu0 %v1995
        %v2072 = vpop.f32.mrf.mxu0
        %v2073 = vadd.f32 %v2041, %v2072
        %2074 = vmatmul.f32.gmra.mxu0 %v1996
        %v2075 = vpop.f32.mrf.mxu0
        %v2076 = vadd.f32 %v2041, %v2075
        %2077 = vmatmul.f32.gmra.mxu0 %v1997
        %v2078 = vpop.f32.mrf.mxu0
        %v2079 = vadd.f32 %v2041, %v2078
        %2080 = vmatmul.f32.gmra.mxu0 %v1998
        %v2081 = vpop.f32.mrf.mxu0
        %v2082 = vadd.f32 %v2041, %v2081
        %2083 = vmatmul.f32.gmra.mxu0 %v1999
        %v2084 = vpop.f32.mrf.mxu0
        %v2085 = vadd.f32 %v2041, %v2084
        %2086 = vmatmul.f32.gmra.mxu0 %v2000
        %v2087 = vpop.f32.mrf.mxu0
        %v2088 = vadd.f32 %v2041, %v2087
        %2089 = vmatmul.f32.gmra.mxu0 %v2001
        %v2090 = vpop.f32.mrf.mxu0
        %v2091 = vadd.f32 %v2041, %v2090
        %2092 = vmatmul.f32.gmra.mxu0 %v2002
        %v2093 = vpop.f32.mrf.mxu0
        %v2094 = vadd.f32 %v2041, %v2093
        %2095 = vmatmul.f32.gmra.mxu0 %v2003
        %v2096 = vpop.f32.mrf.mxu0
        %v2097 = vadd.f32 %v2041, %v2096
        %2098 = vmatmul.f32.gmra.mxu0 %v2004
        %v2099 = vpop.f32.mrf.mxu0
        %v2100 = vadd.f32 %v2041, %v2099
        %2101 = vmatmul.f32.gmra.mxu0 %v2005
        %v2102 = vpop.f32.mrf.mxu0
        %v2103 = vadd.f32 %v2041, %v2102
        %2104 = vmatmul.f32.gmra.mxu0 %v2006
        %v2105 = vpop.f32.mrf.mxu0
        %v2106 = vadd.f32 %v2041, %v2105
        %2107 = vmatmul.f32.gmra.mxu0 %v2007
        %v2108 = vpop.f32.mrf.mxu0
        %v2109 = vadd.f32 %v2041, %v2108
        %2110 = vmatmul.f32.gmra.mxu0 %v2008
        %v2111 = vpop.f32.mrf.mxu0
        %v2112 = vadd.f32 %v2041, %v2111
        %2113 = vmatmul.f32.gmra.mxu0 %v2009
        %v2114 = vpop.f32.mrf.mxu0
        %v2115 = vadd.f32 %v2041, %v2114
        %2116 = vmatmul.f32.gmra.mxu0 %v2010
        %v2117 = vpop.f32.mrf.mxu0
        %v2118 = vadd.f32 %v2041, %v2117
        %2119 = vmatmul.f32.gmra.mxu0 %v2011
        %v2120 = vpop.f32.mrf.mxu0
        %v2121 = vadd.f32 %v2041, %v2120
        %2122 = vmatmul.f32.gmra.mxu0 %v2012
        %v2123 = vpop.f32.mrf.mxu0
        %v2124 = vadd.f32 %v2041, %v2123
        %2125 = vmatmul.f32.gmra.mxu0 %v2013
        %v2126 = vpop.f32.mrf.mxu0
        %v2127 = vadd.f32 %v2041, %v2126
        %2128 = vmatmul.f32.gmra.mxu0 %v2014
        %v2129 = vpop.f32.mrf.mxu0
        %v2130 = vadd.f32 %v2041, %v2129
        %2131 = vmatmul.f32.gmra.mxu0 %v2015
        %v2132 = vpop.f32.mrf.mxu0
        %v2133 = vadd.f32 %v2041, %v2132
        %2134 = vmatmul.f32.gmra.mxu0 %v2016
        %v2135 = vpop.f32.mrf.mxu0
        %v2136 = vadd.f32 %v2041, %v2135
        %2137 = vmatmul.f32.gmra.mxu0 %v2017
        %v2138 = vpop.f32.mrf.mxu0
        %v2139 = vadd.f32 %v2041, %v2138
        %2140 = vmatmul.f32.gmra.mxu0 %v2018
        %v2141 = vpop.f32.mrf.mxu0
        %v2142 = vadd.f32 %v2041, %v2141
        %2143 = vmatmul.f32.gmra.mxu0 %v2019
        %v2144 = vpop.f32.mrf.mxu0
        %v2145 = vadd.f32 %v2041, %v2144
        %2146 = vmatmul.f32.gmra.mxu0 %v2020
        %v2147 = vpop.f32.mrf.mxu0
        %v2148 = vadd.f32 %v2041, %v2147
        %2149 = vmatmul.f32.gmra.mxu0 %v2021
        %v2150 = vpop.f32.mrf.mxu0
        %v2151 = vadd.f32 %v2041, %v2150
        %2152 = vmatmul.f32.gmra.mxu0 %v2022
        %v2153 = vpop.f32.mrf.mxu0
        %v2154 = vadd.f32 %v2041, %v2153
        %2155 = vdwg.mxu0
        %2156 = vst [vmem:[%s210] sm:$0xff] %v2061
        %2157 = vst [vmem:[%s210 + $0x8] sm:$0xff] %v2064
        %2158 = vst [vmem:[%s210 + $0x10] sm:$0xff] %v2067
        %2159 = vst [vmem:[%s210 + $0x18] sm:$0xff] %v2070
        %2160 = vst [vmem:[%s210 + $0x20] sm:$0xff] %v2073
        %2161 = vst [vmem:[%s210 + $0x28] sm:$0xff] %v2076
        %2162 = vst [vmem:[%s210 + $0x30] sm:$0xff] %v2079
        %2163 = vst [vmem:[%s210 + $0x38] sm:$0xff] %v2082
        %2164 = vst [vmem:[%s210 + $0x40] sm:$0xff] %v2085
        %2165 = vst [vmem:[%s210 + $0x48] sm:$0xff] %v2088
        %2166 = vst [vmem:[%s210 + $0x50] sm:$0xff] %v2091
        %2167 = vst [vmem:[%s210 + $0x58] sm:$0xff] %v2094
        %2168 = vst [vmem:[%s210 + $0x60] sm:$0xff] %v2097
        %2169 = vst [vmem:[%s210 + $0x68] sm:$0xff] %v2100
        %2170 = vst [vmem:[%s210 + $0x70] sm:$0xff] %v2103
        %2171 = vst [vmem:[%s210 + $0x78] sm:$0xff] %v2106
        %2172 = vst [vmem:[%s210 + $0x80] sm:$0xff] %v2109
        %2173 = vst [vmem:[%s210 + $0x88] sm:$0xff] %v2112
        %2174 = vst [vmem:[%s210 + $0x90] sm:$0xff] %v2115
        %2175 = vst [vmem:[%s210 + $0x98] sm:$0xff] %v2118
        %2176 = vst [vmem:[%s210 + $0xa0] sm:$0xff] %v2121
        %2177 = vst [vmem:[%s210 + $0xa8] sm:$0xff] %v2124
        %2178 = vst [vmem:[%s210 + $0xb0] sm:$0xff] %v2127
        %2179 = vst [vmem:[%s210 + $0xb8] sm:$0xff] %v2130
        %2180 = vst [vmem:[%s210 + $0xc0] sm:$0xff] %v2133
        %2181 = vst [vmem:[%s210 + $0xc8] sm:$0xff] %v2136
        %2182 = vst [vmem:[%s210 + $0xd0] sm:$0xff] %v2139
        %2183 = vst [vmem:[%s210 + $0xd8] sm:$0xff] %v2142
        %2184 = vst [vmem:[%s210 + $0xe0] sm:$0xff] %v2145
        %2185 = vst [vmem:[%s210 + $0xe8] sm:$0xff] %v2148
        %2186 = vst [vmem:[%s210 + $0xf0] sm:$0xff] %v2151
        %2187 = vst [vmem:[%s210 + $0xf8] sm:$0xff] %v2154
        %s2188 = sand.u32 %s126, 1
        %s2189 = scalar_lea.sflag [#allocation5], %s2188
        %s2190 = sand.u32 %s126, 1
        %s2191 = smul.addr %s2190, 256
        %s2192 = scalar_lea.vmem [#allocation4], %s2191
        // Predicated region
        $region41: #{tpu_custom_call.1} parent=31 // pred_check
          %p2193 = pneg %p136
        $region42: #{tpu_custom_call.1} parent=31 // pred_check_branch
          %2195 = sbr.rel (%p2193) target = $region44
        $region43: #{tpu_custom_call.1} parent=31 // pred_region
          %s2196 = smul.u32 32, %s23
          %2198 = vsyncadd %s2189, 0
          %s2199 = sadd.s32 %s24, %s2196
          %s2200 = smul.addr %s22, 32
          %s2201 = sadd.s32 %s2199, %s2200
          %s2202 = smul.addr %s2201, 8
          %s2203 = scalar_lea.hbm %s3, %s2202
          %s2204 = sshll.u32 %s2192, 4
          %s2205 = int_to_ptr.vmem [resolvable:$true] %s2204
          %s2206 = sshll.u32 %s2203, 4
          %s2207 = int_to_ptr.hbm [resolvable:$true] %s2206
          %2212 = dma.vmem_to_hbm [thread:$0]  %s2205, 4096, %s2207, %s2189, 128, 128, 8
        $region44: #{tpu_custom_call.1} parent=31 // pred_fallthru
          _
      $region32: #{tpu_custom_call.1} parent=5 // pred_fallthru
        _
      %p2213 = scmp.le.s32.totalorder 2, %s12
      // Predicated region
      $region45: #{tpu_custom_call.1} parent=5 // pred_check
        %p2214 = pneg %p2213
      $region46: #{tpu_custom_call.1} parent=5 // pred_check_branch
        %2216 = sbr.rel (%p2214) target = $region48
      $region47: #{tpu_custom_call.1} parent=5 // pred_region
        %s2217 = ssub.s32 %s12, 2
        // Predicated region
        $region49: #{tpu_custom_call.1} parent=47 // pred_check
          %p2218 = pneg %p142
        $region50: #{tpu_custom_call.1} parent=47 // pred_check_branch
          %2220 = sbr.rel (%p2218) target = $region52
        $region51: #{tpu_custom_call.1} parent=47 // pred_region
          %s2221 = sand.u32 %s127, 1
          %s2222 = scalar_lea.sflag [#allocation5], %s2221
          %s2223 = sand.u32 %s127, 1
          %s2224 = smul.addr %s2223, 256
          %s2225 = scalar_lea.vmem [#allocation4], %s2224
          %2227 = dma.done %s2222, 4096
        $region52: #{tpu_custom_call.1} parent=47 // pred_fallthru
          _
      $region48: #{tpu_custom_call.1} parent=5 // pred_fallthru
        _
    $region6: #{tpu_custom_call.1} parent=1 // loop_footer
      %s16 = sadd.s32 1, %s12
    $region7: #{tpu_custom_call.1} parent=1 // loop_footer_branch
      %11 = sbr.rel target = $region3
    $region8: #{tpu_custom_call.1} parent=1 // loop_exit
      _
    %2228 = vsyncpa [#allocation5], 1
    %s2229 = scalar_lea.sflag [#allocation5], 1
    %2230 = vsyncpa %s2229, 1

</llo_original>
